<compile_context>
chip_gen: v7x
topology: tpu7x:2x2x1
jax: 0.10.0
libtpu: 0.0.40
codegen_flags: <defaults>
</compile_context>

<pallas_src>
import functools

import numpy as np
import jax
import jax.numpy as jnp
from jax.experimental import pallas as pl
from jax.experimental.pallas import tpu as pltpu

HIDDEN = 64          # module default hidden_dim
HIDDEN_PAD = 128     # padded to full lane width
IN_DIM = 3
IN_PAD = 8           # padded input-feature dim
OUT_DIM = 1
OUT_PAD = 8          # padded output rows (one f32 sublane tile)


def samplenet_kernel(x_ref, w1_ref, b1_ref, w2_ref, b2_ref, w3_ref, b3_ref,
                     wf_ref, bf_ref, o_ref):
    """One point-tile of the SampleNet MLP, run transposed (points on lanes).

    x_ref  : (IN_PAD, tm)              bf16  padded features x tile of points
    w1_ref : (HIDDEN_PAD, IN_PAD)      bf16  (PyTorch (out, in) orientation)
    w2_ref, w3_ref : (HIDDEN_PAD, HIDDEN_PAD) bf16
    wf_ref : (OUT_PAD, HIDDEN_PAD)     bf16
    b*_ref : (HIDDEN_PAD, 1) / (OUT_PAD, 1)   f32 (broadcast along lanes)
    o_ref  : (OUT_PAD, tm)             f32   row 0 = s, rows 1.. are zero
    """
    x = x_ref[...]

    h = jnp.dot(w1_ref[...], x, preferred_element_type=jnp.float32) + b1_ref[...]
    h = jnp.maximum(h, 0.0).astype(jnp.bfloat16)

    h = jnp.dot(w2_ref[...], h, preferred_element_type=jnp.float32) + b2_ref[...]
    h = jnp.maximum(h, 0.0).astype(jnp.bfloat16)

    h = jnp.dot(w3_ref[...], h, preferred_element_type=jnp.float32) + b3_ref[...]
    h = jnp.maximum(h, 0.0).astype(jnp.bfloat16)

    s = jnp.dot(wf_ref[...], h, preferred_element_type=jnp.float32) + bf_ref[...]
    o_ref[...] = s


def _pad2(a, shape):
    out = jnp.zeros(shape, a.dtype)
    return out.at[:a.shape[0], :a.shape[1]].set(a)


@functools.partial(jax.jit, static_argnames=("tm",))
def samplenet_forward(params, x, *, tm=512):
    """params: [(w, b)] * 4 with PyTorch nn.Linear orientation w: (out, in)."""
    assert tm % 128 == 0
    (w1, b1), (w2, b2), (w3, b3), (wf, bf) = params

    lead = x.shape[:-1]
    assert x.shape[-1] == IN_DIM
    M = int(np.prod(lead))
    M_pad = pl.cdiv(M, tm) * tm

    # (M, 3) -> zero-padded, transposed (8, M_pad): points on the lane axis.
    x_flat = x.reshape(M, IN_DIM).astype(jnp.float32)
    x_pad = jnp.zeros((M_pad, IN_PAD), jnp.float32).at[:M, :IN_DIM].set(x_flat)
    x_t = x_pad.T.astype(jnp.bfloat16)                       # (IN_PAD, M_pad)

    # Zero-pad weights/biases to lane/sublane-aligned shapes; bf16 for the MXU.
    w1p = _pad2(w1, (HIDDEN_PAD, IN_PAD)).astype(jnp.bfloat16)
    w2p = _pad2(w2, (HIDDEN_PAD, HIDDEN_PAD)).astype(jnp.bfloat16)
    w3p = _pad2(w3, (HIDDEN_PAD, HIDDEN_PAD)).astype(jnp.bfloat16)
    wfp = _pad2(wf, (OUT_PAD, HIDDEN_PAD)).astype(jnp.bfloat16)
    b1p = _pad2(b1.reshape(-1, 1), (HIDDEN_PAD, 1)).astype(jnp.float32)
    b2p = _pad2(b2.reshape(-1, 1), (HIDDEN_PAD, 1)).astype(jnp.float32)
    b3p = _pad2(b3.reshape(-1, 1), (HIDDEN_PAD, 1)).astype(jnp.float32)
    bfp = _pad2(bf.reshape(-1, 1), (OUT_PAD, 1)).astype(jnp.float32)

    grid = (M_pad // tm,)
    full = lambda shape: pl.BlockSpec(shape, lambda i: (0, 0))

    out = pl.pallas_call(
        samplenet_kernel,
        out_shape=jax.ShapeDtypeStruct((OUT_PAD, M_pad), jnp.float32),
        grid_spec=pltpu.PrefetchScalarGridSpec(
            num_scalar_prefetch=0,
            grid=grid,
            in_specs=[
                pl.BlockSpec((IN_PAD, tm), lambda i: (0, i)),   # x tile
                full((HIDDEN_PAD, IN_PAD)),                     # w1
                full((HIDDEN_PAD, 1)),                          # b1
                full((HIDDEN_PAD, HIDDEN_PAD)),                 # w2
                full((HIDDEN_PAD, 1)),                          # b2
                full((HIDDEN_PAD, HIDDEN_PAD)),                 # w3
                full((HIDDEN_PAD, 1)),                          # b3
                full((OUT_PAD, HIDDEN_PAD)),                    # wf
                full((OUT_PAD, 1)),                             # bf
            ],
            out_specs=pl.BlockSpec((OUT_PAD, tm), lambda i: (0, i)),
        ),
        compiler_params=pltpu.CompilerParams(
            dimension_semantics=("parallel",)),
    )(x_t, w1p, b1p, w2p, b2p, w3p, b3p, wfp, bfp)

    s = out[0, :M]                                            # lane-dense row 0
    return s.reshape(*lead, OUT_DIM)


def samplenet_reference(params, x):
    """Pure-JAX reference of SampleNet.forward (f32)."""
    (w1, b1), (w2, b2), (w3, b3), (wf, bf) = params
    h = x.reshape(-1, IN_DIM)
    h = jnp.maximum(h @ w1.T + b1, 0.0)
    h = jnp.maximum(h @ w2.T + b2, 0.0)
    h = jnp.maximum(h @ w3.T + b3, 0.0)
    s = h @ wf.T + bf
    return s.reshape(*x.shape[:-1], OUT_DIM)


def init_params(key):
    """PyTorch nn.Linear default init: U(-1/sqrt(fan_in), 1/sqrt(fan_in))."""
    dims = [(IN_DIM, HIDDEN), (HIDDEN, HIDDEN), (HIDDEN, HIDDEN), (HIDDEN, OUT_DIM)]
    params = []
    for fan_in, fan_out in dims:
        key, kw, kb = jax.random.split(key, 3)
        bound = 1.0 / float(np.sqrt(fan_in))
        w = jax.random.uniform(kw, (fan_out, fan_in), jnp.float32, -bound, bound)
        b = jax.random.uniform(kb, (fan_out,), jnp.float32, -bound, bound)
        params.append((w, b))
    return params


# TODO(synk): get_intersections / calculate_intersection /
#             get_s_and_intersections_target_lbs_with_deform (per-level gather
#             + argmax root-finding helpers) are not part of forward() and are
#             not translated here.

if __name__ == "__main__":
    key = jax.random.PRNGKey(0)
    kx, kp = jax.random.split(key)

    B, N_rays, N_points = 2, 32, 16                 # 1024 points total
    x = jax.random.normal(kx, (B, N_rays, N_points, IN_DIM), jnp.float32) * 0.5

    params = init_params(kp)

    s = samplenet_forward(params, x, tm=512)
    jax.block_until_ready(s)

    assert s.shape == (B, N_rays, N_points, OUT_DIM)
    assert bool(jnp.all(jnp.isfinite(s)))

    s_ref = samplenet_reference(params, x)
    err = float(jnp.max(jnp.abs(s - s_ref)))
    assert err < 5e-2, f"max abs err vs reference: {err}"

    print("KERNEL_OK")
</pallas_src>

<mosaic_0001>
module attributes {stable_mosaic.version = 11 : i64} {
  func.func @samplenet_kernel(%arg0: i32, %arg1: memref<8x512xbf16, #tpu.memory_space<vmem>>, %arg2: memref<128x8xbf16, #tpu.memory_space<vmem>>, %arg3: memref<128x1xf32, #tpu.memory_space<vmem>>, %arg4: memref<128x128xbf16, #tpu.memory_space<vmem>>, %arg5: memref<128x1xf32, #tpu.memory_space<vmem>>, %arg6: memref<128x128xbf16, #tpu.memory_space<vmem>>, %arg7: memref<128x1xf32, #tpu.memory_space<vmem>>, %arg8: memref<8x128xbf16, #tpu.memory_space<vmem>>, %arg9: memref<8x1xf32, #tpu.memory_space<vmem>>, %arg10: memref<8x512xf32, #tpu.memory_space<vmem>>) attributes {dimension_semantics = [#tpu.dimension_semantics<parallel>], iteration_bounds = array<i64: 2>, scalar_prefetch = 0 : i64, scratch_operands = 0 : i64, tpu.core_type = #tpu.core_type<tc>, window_params = [{transform_indices = @transform_0, window_bounds = array<i64: 8, 512>}, {pipeline_mode = #tpu.pipeline_mode<synchronous>, transform_indices = @transform_1, window_bounds = array<i64: 128, 8>}, {pipeline_mode = #tpu.pipeline_mode<synchronous>, transform_indices = @transform_2, window_bounds = array<i64: 128, 1>}, {pipeline_mode = #tpu.pipeline_mode<synchronous>, transform_indices = @transform_3, window_bounds = array<i64: 128, 128>}, {pipeline_mode = #tpu.pipeline_mode<synchronous>, transform_indices = @transform_4, window_bounds = array<i64: 128, 1>}, {pipeline_mode = #tpu.pipeline_mode<synchronous>, transform_indices = @transform_5, window_bounds = array<i64: 128, 128>}, {pipeline_mode = #tpu.pipeline_mode<synchronous>, transform_indices = @transform_6, window_bounds = array<i64: 128, 1>}, {pipeline_mode = #tpu.pipeline_mode<synchronous>, transform_indices = @transform_7, window_bounds = array<i64: 8, 128>}, {pipeline_mode = #tpu.pipeline_mode<synchronous>, transform_indices = @transform_8, window_bounds = array<i64: 8, 1>}, {transform_indices = @transform_9, window_bounds = array<i64: 8, 512>}]} {
    %c0 = arith.constant 0 : index
    %c0_0 = arith.constant 0 : index
    %0 = vector.load %arg1[%c0, %c0_0] : memref<8x512xbf16, #tpu.memory_space<vmem>>, vector<8x512xbf16>
    %c0_1 = arith.constant 0 : index
    %c0_2 = arith.constant 0 : index
    %1 = vector.load %arg2[%c0_1, %c0_2] : memref<128x8xbf16, #tpu.memory_space<vmem>>, vector<128x8xbf16>
    %cst = arith.constant dense<0.000000e+00> : vector<128x512xf32>
    %2 = tpu.matmul %1, %0, %cst {dimension_numbers = #tpu.dot_dimension_numbers<[1], [0], [0], [1], [0, 0, 1, 1], [], []>} : vector<128x8xbf16>, vector<8x512xbf16>, vector<128x512xf32> -> vector<128x512xf32>
    %c0_3 = arith.constant 0 : index
    %c0_4 = arith.constant 0 : index
    %3 = vector.load %arg3[%c0_3, %c0_4] : memref<128x1xf32, #tpu.memory_space<vmem>>, vector<128x1xf32>
    %4 = vector.broadcast %3 : vector<128x1xf32> to vector<128x512xf32>
    %5 = arith.addf %2, %4 : vector<128x512xf32>
    %cst_5 = arith.constant 0.000000e+00 : f32
    %6 = vector.broadcast %cst_5 : f32 to vector<128x512xf32>
    %7 = arith.maximumf %5, %6 : vector<128x512xf32>
    %8 = arith.truncf %7 : vector<128x512xf32> to vector<128x512xbf16>
    %c0_6 = arith.constant 0 : index
    %c0_7 = arith.constant 0 : index
    %9 = vector.load %arg4[%c0_6, %c0_7] : memref<128x128xbf16, #tpu.memory_space<vmem>>, vector<128x128xbf16>
    %cst_8 = arith.constant dense<0.000000e+00> : vector<128x512xf32>
    %10 = tpu.matmul %9, %8, %cst_8 {dimension_numbers = #tpu.dot_dimension_numbers<[1], [0], [0], [1], [0, 0, 1, 1], [], []>} : vector<128x128xbf16>, vector<128x512xbf16>, vector<128x512xf32> -> vector<128x512xf32>
    %c0_9 = arith.constant 0 : index
    %c0_10 = arith.constant 0 : index
    %11 = vector.load %arg5[%c0_9, %c0_10] : memref<128x1xf32, #tpu.memory_space<vmem>>, vector<128x1xf32>
    %12 = vector.broadcast %11 : vector<128x1xf32> to vector<128x512xf32>
    %13 = arith.addf %10, %12 : vector<128x512xf32>
    %cst_11 = arith.constant 0.000000e+00 : f32
    %14 = vector.broadcast %cst_11 : f32 to vector<128x512xf32>
    %15 = arith.maximumf %13, %14 : vector<128x512xf32>
    %16 = arith.truncf %15 : vector<128x512xf32> to vector<128x512xbf16>
    %c0_12 = arith.constant 0 : index
    %c0_13 = arith.constant 0 : index
    %17 = vector.load %arg6[%c0_12, %c0_13] : memref<128x128xbf16, #tpu.memory_space<vmem>>, vector<128x128xbf16>
    %cst_14 = arith.constant dense<0.000000e+00> : vector<128x512xf32>
    %18 = tpu.matmul %17, %16, %cst_14 {dimension_numbers = #tpu.dot_dimension_numbers<[1], [0], [0], [1], [0, 0, 1, 1], [], []>} : vector<128x128xbf16>, vector<128x512xbf16>, vector<128x512xf32> -> vector<128x512xf32>
    %c0_15 = arith.constant 0 : index
    %c0_16 = arith.constant 0 : index
    %19 = vector.load %arg7[%c0_15, %c0_16] : memref<128x1xf32, #tpu.memory_space<vmem>>, vector<128x1xf32>
    %20 = vector.broadcast %19 : vector<128x1xf32> to vector<128x512xf32>
    %21 = arith.addf %18, %20 : vector<128x512xf32>
    %cst_17 = arith.constant 0.000000e+00 : f32
    %22 = vector.broadcast %cst_17 : f32 to vector<128x512xf32>
    %23 = arith.maximumf %21, %22 : vector<128x512xf32>
    %24 = arith.truncf %23 : vector<128x512xf32> to vector<128x512xbf16>
    %c0_18 = arith.constant 0 : index
    %c0_19 = arith.constant 0 : index
    %25 = vector.load %arg8[%c0_18, %c0_19] : memref<8x128xbf16, #tpu.memory_space<vmem>>, vector<8x128xbf16>
    %cst_20 = arith.constant dense<0.000000e+00> : vector<8x512xf32>
    %26 = tpu.matmul %25, %24, %cst_20 {dimension_numbers = #tpu.dot_dimension_numbers<[1], [0], [0], [1], [0, 0, 1, 1], [], []>} : vector<8x128xbf16>, vector<128x512xbf16>, vector<8x512xf32> -> vector<8x512xf32>
    %c0_21 = arith.constant 0 : index
    %c0_22 = arith.constant 0 : index
    %27 = vector.load %arg9[%c0_21, %c0_22] : memref<8x1xf32, #tpu.memory_space<vmem>>, vector<8x1xf32>
    %28 = vector.broadcast %27 : vector<8x1xf32> to vector<8x512xf32>
    %29 = arith.addf %26, %28 : vector<8x512xf32>
    %c0_23 = arith.constant 0 : index
    %c0_24 = arith.constant 0 : index
    %30 = vector.load %arg10[%c0_23, %c0_24] : memref<8x512xf32, #tpu.memory_space<vmem>>, vector<8x512xf32>
    tpu.vector_store %arg10[%c0_23, %c0_24], %29 {strides = array<i32>} : memref<8x512xf32, #tpu.memory_space<vmem>>, vector<8x512xf32>,
    return
  }
  func.func @transform_0(%arg0: i32) -> (i32, i32) {
    %c0_i32 = arith.constant 0 : i32
    %c0_i32_0 = arith.constant 0 : i32
    return %c0_i32, %arg0 : i32, i32
  }
  func.func @transform_1(%arg0: i32) -> (i32, i32) {
    %c0_i32 = arith.constant 0 : i32
    %c0_i32_0 = arith.constant 0 : i32
    %c0_i32_1 = arith.constant 0 : i32
    return %c0_i32, %c0_i32_0 : i32, i32
  }
  func.func @transform_2(%arg0: i32) -> (i32, i32) {
    %c0_i32 = arith.constant 0 : i32
    %c0_i32_0 = arith.constant 0 : i32
    %c0_i32_1 = arith.constant 0 : i32
    return %c0_i32, %c0_i32_0 : i32, i32
  }
  func.func @transform_3(%arg0: i32) -> (i32, i32) {
    %c0_i32 = arith.constant 0 : i32
    %c0_i32_0 = arith.constant 0 : i32
    %c0_i32_1 = arith.constant 0 : i32
    return %c0_i32, %c0_i32_0 : i32, i32
  }
  func.func @transform_4(%arg0: i32) -> (i32, i32) {
    %c0_i32 = arith.constant 0 : i32
    %c0_i32_0 = arith.constant 0 : i32
    %c0_i32_1 = arith.constant 0 : i32
    return %c0_i32, %c0_i32_0 : i32, i32
  }
  func.func @transform_5(%arg0: i32) -> (i32, i32) {
    %c0_i32 = arith.constant 0 : i32
    %c0_i32_0 = arith.constant 0 : i32
    %c0_i32_1 = arith.constant 0 : i32
    return %c0_i32, %c0_i32_0 : i32, i32
  }
  func.func @transform_6(%arg0: i32) -> (i32, i32) {
    %c0_i32 = arith.constant 0 : i32
    %c0_i32_0 = arith.constant 0 : i32
    %c0_i32_1 = arith.constant 0 : i32
    return %c0_i32, %c0_i32_0 : i32, i32
  }
  func.func @transform_7(%arg0: i32) -> (i32, i32) {
    %c0_i32 = arith.constant 0 : i32
    %c0_i32_0 = arith.constant 0 : i32
    %c0_i32_1 = arith.constant 0 : i32
    return %c0_i32, %c0_i32_0 : i32, i32
  }
  func.func @transform_8(%arg0: i32) -> (i32, i32) {
    %c0_i32 = arith.constant 0 : i32
    %c0_i32_0 = arith.constant 0 : i32
    %c0_i32_1 = arith.constant 0 : i32
    return %c0_i32, %c0_i32_0 : i32, i32
  }
  func.func @transform_9(%arg0: i32) -> (i32, i32) {
    %c0_i32 = arith.constant 0 : i32
    %c0_i32_0 = arith.constant 0 : i32
    return %c0_i32, %arg0 : i32, i32
  }
}

</mosaic_0001>

<llo_original>
// kernel: squeeze.1
$region0: #{squeeze.1}
  %s0 = inlined_call_operand.vmem [shape: f32[1024], index: 0, kind: input, shape index: {}]
  %s1 = inlined_call_operand.vmem [shape: f32[2,32,16,1], index: 1, kind: output, shape index: {}]
  %v2 = vld [vmem:[%s0] sm:$0xff]
  %vm3 = vcmask 130048
  %4 = vst.msk [vmem:[%s1] ss:$8 sm:$0xf] %vm3, %v2
  %5 = vst.msk [vmem:[%s1] ss:$8 sm:$0xf0] %vm3, %v2
  %v6 = vld [vmem:[%s0] sm:$0xff]
  %7 = vrot.lane.b32.xlu0 %v6, 112
  %v8 = vpop.permute.xlu0 %7
  %vm9 = vcmask 130048
  %s10 = scalar_lea.vmem %s1, 1
  %11 = vst.msk [vmem:[%s10] ss:$8 sm:$0xf] %vm9, %v8
  %s12 = scalar_lea.vmem %s1, 1
  %13 = vst.msk [vmem:[%s12] ss:$8 sm:$0xf0] %vm9, %v8
  %v14 = vld [vmem:[%s0] sm:$0xff]
  %15 = vrot.lane.b32.xlu0 %v14, 96
  %v16 = vpop.permute.xlu0 %15
  %vm17 = vcmask 130048
  %s18 = scalar_lea.vmem %s1, 2
  %19 = vst.msk [vmem:[%s18] ss:$8 sm:$0xf] %vm17, %v16
  %s20 = scalar_lea.vmem %s1, 2
  %21 = vst.msk [vmem:[%s20] ss:$8 sm:$0xf0] %vm17, %v16
  %v22 = vld [vmem:[%s0] sm:$0xff]
  %23 = vrot.lane.b32.xlu0 %v22, 80
  %v24 = vpop.permute.xlu0 %23
  %vm25 = vcmask 130048
  %s26 = scalar_lea.vmem %s1, 3
  %27 = vst.msk [vmem:[%s26] ss:$8 sm:$0xf] %vm25, %v24
  %s28 = scalar_lea.vmem %s1, 3
  %29 = vst.msk [vmem:[%s28] ss:$8 sm:$0xf0] %vm25, %v24
  %v30 = vld [vmem:[%s0] sm:$0xff]
  %31 = vrot.lane.b32.xlu0 %v30, 64
  %v32 = vpop.permute.xlu0 %31
  %vm33 = vcmask 130048
  %s34 = scalar_lea.vmem %s1, 4
  %35 = vst.msk [vmem:[%s34] ss:$8 sm:$0xf] %vm33, %v32
  %s36 = scalar_lea.vmem %s1, 4
  %37 = vst.msk [vmem:[%s36] ss:$8 sm:$0xf0] %vm33, %v32
  %v38 = vld [vmem:[%s0] sm:$0xff]
  %39 = vrot.lane.b32.xlu0 %v38, 48
  %v40 = vpop.permute.xlu0 %39
  %vm41 = vcmask 130048
  %s42 = scalar_lea.vmem %s1, 5
  %43 = vst.msk [vmem:[%s42] ss:$8 sm:$0xf] %vm41, %v40
  %s44 = scalar_lea.vmem %s1, 5
  %45 = vst.msk [vmem:[%s44] ss:$8 sm:$0xf0] %vm41, %v40
  %v46 = vld [vmem:[%s0] sm:$0xff]
  %47 = vrot.lane.b32.xlu0 %v46, 32
  %v48 = vpop.permute.xlu0 %47
  %vm49 = vcmask 130048
  %s50 = scalar_lea.vmem %s1, 6
  %51 = vst.msk [vmem:[%s50] ss:$8 sm:$0xf] %vm49, %v48
  %s52 = scalar_lea.vmem %s1, 6
  %53 = vst.msk [vmem:[%s52] ss:$8 sm:$0xf0] %vm49, %v48
  %v54 = vld [vmem:[%s0] sm:$0xff]
  %55 = vrot.lane.b32.xlu0 %v54, 16
  %v56 = vpop.permute.xlu0 %55
  %vm57 = vcmask 130048
  %s58 = scalar_lea.vmem %s1, 7
  %59 = vst.msk [vmem:[%s58] ss:$8 sm:$0xf] %vm57, %v56
  %s60 = scalar_lea.vmem %s1, 7
  %61 = vst.msk [vmem:[%s60] ss:$8 sm:$0xf0] %vm57, %v56

// kernel: samplenet_forward.1
$region0: #{samplenet_forward.1}
  #allocation0 [shape = 'u32[]', space=smem, size = 0x4, offset = 0x4, fixed_abs, tag = 'smem constant byte address 0x4 - core index']
  #allocation1 [shape = 'u32[144,128]{1,0:T(1,128)}', space=vmem, size = 0x12000, scoped, tag = 'internal scratch']
  %s0 = inlined_call_operand.vmem [shape: bf16[8,1024], index: 0, kind: input, shape index: {}]
  %s1 = inlined_call_operand.vmem [shape: bf16[128,8], index: 1, kind: input, shape index: {}]
  %s2 = inlined_call_operand.vmem [shape: f32[128,1], index: 2, kind: input, shape index: {}]
  %s3 = inlined_call_operand.vmem [shape: bf16[128,128], index: 3, kind: input, shape index: {}]
  %s4 = inlined_call_operand.vmem [shape: f32[128,1], index: 4, kind: input, shape index: {}]
  %s5 = inlined_call_operand.vmem [shape: bf16[128,128], index: 5, kind: input, shape index: {}]
  %s6 = inlined_call_operand.vmem [shape: f32[128,1], index: 6, kind: input, shape index: {}]
  %s7 = inlined_call_operand.vmem [shape: bf16[8,128], index: 7, kind: input, shape index: {}]
  %s8 = inlined_call_operand.vmem [shape: f32[8,1], index: 8, kind: input, shape index: {}]
  %s9 = inlined_call_operand.vmem [shape: f32[8,1024], index: 9, kind: output, shape index: {}]
  %s10 = sld [smem:[#allocation0]]
  $region69: #{samplenet_forward.1} parent=0
    _
  %s12 = ssub.s32 1, %s10
  %s13 = scalar_select 0, %s12, %s10
  loop: start=0, step=1, limit=4
  $region2: #{samplenet_forward.1} parent=0 // loop_pre_header
    _
  $region3: #{samplenet_forward.1} parent=0 // loop_header
    %s15 = sphi 0, %s19
    %p16 = scmp.ge.s32.totalorder %s15, 4
    %s25 = sphi 0, %s27
    %s28 = sphi 0, %s25
    %s29 = sphi 0, %s28
    %s45 = sphi 0, %s29
    %s49 = sphi 0, %s49
    %s51 = sphi 0, %s49
    %s52 = sphi 0, %s51
    %s66 = sphi 0, %s52
    %s70 = sphi 0, %s70
    %s72 = sphi 0, %s70
    %s73 = sphi 0, %s72
    %s87 = sphi 0, %s73
    %s91 = sphi 0, %s91
    %s93 = sphi 0, %s91
    %s94 = sphi 0, %s93
    %s108 = sphi 0, %s94
    %s112 = sphi 0, %s112
    %s114 = sphi 0, %s112
    %s115 = sphi 0, %s114
    %s129 = sphi 0, %s115
    %s133 = sphi 0, %s133
    %s135 = sphi 0, %s133
    %s136 = sphi 0, %s135
    %s150 = sphi 0, %s136
    %s154 = sphi 0, %s154
    %s156 = sphi 0, %s154
    %s157 = sphi 0, %s156
    %s171 = sphi 0, %s157
    %s175 = sphi 0, %s175
    %s177 = sphi 0, %s175
    %s178 = sphi 0, %s177
    %s192 = sphi 0, %s178
    %s196 = sphi 0, %s196
    %s198 = sphi 0, %s196
    %s199 = sphi 0, %s198
    %s213 = sphi 0, %s199
    %s219 = sphi 0, %s221
    %s222 = sphi 0, %s219
    %s223 = sphi 0, %s222
    %s239 = sphi 0, %s223
  $region4: #{samplenet_forward.1} parent=0 // loop_header_branch
    %18 = sbr.rel (%p16) target = $region8
  $region5: #{samplenet_forward.1} parent=0 // loop_body
    %s20 = ssub.s32 %s15, 1
    %s21 = ssub.s32 %s15, 2
    %s22 = sadd.s32 %s15, 1
    %s23 = ssub.s32 %s15, %s22
    %p24 = scmp.eq.s32.totalorder %s23, 0
    %s26 = sadd.s32 %s25, 1
    %s27 = scalar_select %p24, %s25, %s26
    %p30 = pneg %p24
    %p31 = scmp.eq.s32.totalorder %s15, 1
    %p32 = por %p30, %p31
    %p33 = scmp.ne.s32.totalorder %s25, %s28
    %p34 = scmp.eq.s32.totalorder %s15, 0
    %p35 = por %p33, %p34
    %p36 = scmp.ne.s32.totalorder %s25, %s28
    %p37 = scmp.eq.s32.totalorder %s20, 1
    %p38 = por %p36, %p37
    %p39 = scmp.ne.s32.totalorder %s28, %s29
    %p40 = scmp.eq.s32.totalorder %s20, 0
    %p41 = por %p39, %p40
    %p42 = scmp.ne.s32.totalorder %s28, %s29
    %p43 = scmp.eq.s32.totalorder %s21, 1
    %p44 = por %p42, %p43
    %p46 = scmp.ne.s32.totalorder %s29, %s45
    %p47 = scmp.eq.s32.totalorder %s21, 0
    %p48 = por %p46, %p47
    %s50 = sadd.s32 %s49, 1
    %p53 = scmp.eq.s32.totalorder %s15, 1
    %p54 = scmp.ne.s32.totalorder %s49, %s51
    %p55 = scmp.eq.s32.totalorder %s15, 0
    %p56 = por %p54, %p55
    %p57 = scmp.ne.s32.totalorder %s49, %s51
    %p58 = scmp.eq.s32.totalorder %s20, 1
    %p59 = por %p57, %p58
    %p60 = scmp.ne.s32.totalorder %s51, %s52
    %p61 = scmp.eq.s32.totalorder %s20, 0
    %p62 = por %p60, %p61
    %p63 = scmp.ne.s32.totalorder %s51, %s52
    %p64 = scmp.eq.s32.totalorder %s21, 1
    %p65 = por %p63, %p64
    %p67 = scmp.ne.s32.totalorder %s52, %s66
    %p68 = scmp.eq.s32.totalorder %s21, 0
    %p69 = por %p67, %p68
    %s71 = sadd.s32 %s70, 1
    %p74 = scmp.eq.s32.totalorder %s15, 1
    %p75 = scmp.ne.s32.totalorder %s70, %s72
    %p76 = scmp.eq.s32.totalorder %s15, 0
    %p77 = por %p75, %p76
    %p78 = scmp.ne.s32.totalorder %s70, %s72
    %p79 = scmp.eq.s32.totalorder %s20, 1
    %p80 = por %p78, %p79
    %p81 = scmp.ne.s32.totalorder %s72, %s73
    %p82 = scmp.eq.s32.totalorder %s20, 0
    %p83 = por %p81, %p82
    %p84 = scmp.ne.s32.totalorder %s72, %s73
    %p85 = scmp.eq.s32.totalorder %s21, 1
    %p86 = por %p84, %p85
    %p88 = scmp.ne.s32.totalorder %s73, %s87
    %p89 = scmp.eq.s32.totalorder %s21, 0
    %p90 = por %p88, %p89
    %s92 = sadd.s32 %s91, 1
    %p95 = scmp.eq.s32.totalorder %s15, 1
    %p96 = scmp.ne.s32.totalorder %s91, %s93
    %p97 = scmp.eq.s32.totalorder %s15, 0
    %p98 = por %p96, %p97
    %p99 = scmp.ne.s32.totalorder %s91, %s93
    %p100 = scmp.eq.s32.totalorder %s20, 1
    %p101 = por %p99, %p100
    %p102 = scmp.ne.s32.totalorder %s93, %s94
    %p103 = scmp.eq.s32.totalorder %s20, 0
    %p104 = por %p102, %p103
    %p105 = scmp.ne.s32.totalorder %s93, %s94
    %p106 = scmp.eq.s32.totalorder %s21, 1
    %p107 = por %p105, %p106
    %p109 = scmp.ne.s32.totalorder %s94, %s108
    %p110 = scmp.eq.s32.totalorder %s21, 0
    %p111 = por %p109, %p110
    %s113 = sadd.s32 %s112, 1
    %p116 = scmp.eq.s32.totalorder %s15, 1
    %p117 = scmp.ne.s32.totalorder %s112, %s114
    %p118 = scmp.eq.s32.totalorder %s15, 0
    %p119 = por %p117, %p118
    %p120 = scmp.ne.s32.totalorder %s112, %s114
    %p121 = scmp.eq.s32.totalorder %s20, 1
    %p122 = por %p120, %p121
    %p123 = scmp.ne.s32.totalorder %s114, %s115
    %p124 = scmp.eq.s32.totalorder %s20, 0
    %p125 = por %p123, %p124
    %p126 = scmp.ne.s32.totalorder %s114, %s115
    %p127 = scmp.eq.s32.totalorder %s21, 1
    %p128 = por %p126, %p127
    %p130 = scmp.ne.s32.totalorder %s115, %s129
    %p131 = scmp.eq.s32.totalorder %s21, 0
    %p132 = por %p130, %p131
    %s134 = sadd.s32 %s133, 1
    %p137 = scmp.eq.s32.totalorder %s15, 1
    %p138 = scmp.ne.s32.totalorder %s133, %s135
    %p139 = scmp.eq.s32.totalorder %s15, 0
    %p140 = por %p138, %p139
    %p141 = scmp.ne.s32.totalorder %s133, %s135
    %p142 = scmp.eq.s32.totalorder %s20, 1
    %p143 = por %p141, %p142
    %p144 = scmp.ne.s32.totalorder %s135, %s136
    %p145 = scmp.eq.s32.totalorder %s20, 0
    %p146 = por %p144, %p145
    %p147 = scmp.ne.s32.totalorder %s135, %s136
    %p148 = scmp.eq.s32.totalorder %s21, 1
    %p149 = por %p147, %p148
    %p151 = scmp.ne.s32.totalorder %s136, %s150
    %p152 = scmp.eq.s32.totalorder %s21, 0
    %p153 = por %p151, %p152
    %s155 = sadd.s32 %s154, 1
    %p158 = scmp.eq.s32.totalorder %s15, 1
    %p159 = scmp.ne.s32.totalorder %s154, %s156
    %p160 = scmp.eq.s32.totalorder %s15, 0
    %p161 = por %p159, %p160
    %p162 = scmp.ne.s32.totalorder %s154, %s156
    %p163 = scmp.eq.s32.totalorder %s20, 1
    %p164 = por %p162, %p163
    %p165 = scmp.ne.s32.totalorder %s156, %s157
    %p166 = scmp.eq.s32.totalorder %s20, 0
    %p167 = por %p165, %p166
    %p168 = scmp.ne.s32.totalorder %s156, %s157
    %p169 = scmp.eq.s32.totalorder %s21, 1
    %p170 = por %p168, %p169
    %p172 = scmp.ne.s32.totalorder %s157, %s171
    %p173 = scmp.eq.s32.totalorder %s21, 0
    %p174 = por %p172, %p173
    %s176 = sadd.s32 %s175, 1
    %p179 = scmp.eq.s32.totalorder %s15, 1
    %p180 = scmp.ne.s32.totalorder %s175, %s177
    %p181 = scmp.eq.s32.totalorder %s15, 0
    %p182 = por %p180, %p181
    %p183 = scmp.ne.s32.totalorder %s175, %s177
    %p184 = scmp.eq.s32.totalorder %s20, 1
    %p185 = por %p183, %p184
    %p186 = scmp.ne.s32.totalorder %s177, %s178
    %p187 = scmp.eq.s32.totalorder %s20, 0
    %p188 = por %p186, %p187
    %p189 = scmp.ne.s32.totalorder %s177, %s178
    %p190 = scmp.eq.s32.totalorder %s21, 1
    %p191 = por %p189, %p190
    %p193 = scmp.ne.s32.totalorder %s178, %s192
    %p194 = scmp.eq.s32.totalorder %s21, 0
    %p195 = por %p193, %p194
    %s197 = sadd.s32 %s196, 1
    %p200 = scmp.eq.s32.totalorder %s15, 1
    %p201 = scmp.ne.s32.totalorder %s196, %s198
    %p202 = scmp.eq.s32.totalorder %s15, 0
    %p203 = por %p201, %p202
    %p204 = scmp.ne.s32.totalorder %s196, %s198
    %p205 = scmp.eq.s32.totalorder %s20, 1
    %p206 = por %p204, %p205
    %p207 = scmp.ne.s32.totalorder %s198, %s199
    %p208 = scmp.eq.s32.totalorder %s20, 0
    %p209 = por %p207, %p208
    %p210 = scmp.ne.s32.totalorder %s198, %s199
    %p211 = scmp.eq.s32.totalorder %s21, 1
    %p212 = por %p210, %p211
    %p214 = scmp.ne.s32.totalorder %s199, %s213
    %p215 = scmp.eq.s32.totalorder %s21, 0
    %p216 = por %p214, %p215
    %s217 = ssub.s32 %s15, %s22
    %p218 = scmp.eq.s32.totalorder %s217, 0
    %s220 = sadd.s32 %s219, 1
    %s221 = scalar_select %p218, %s219, %s220
    %p224 = pneg %p218
    %p225 = scmp.eq.s32.totalorder %s15, 1
    %p226 = por %p224, %p225
    %p227 = scmp.ne.s32.totalorder %s219, %s222
    %p228 = scmp.eq.s32.totalorder %s15, 0
    %p229 = por %p227, %p228
    %p230 = scmp.ne.s32.totalorder %s219, %s222
    %p231 = scmp.eq.s32.totalorder %s20, 1
    %p232 = por %p230, %p231
    %p233 = scmp.ne.s32.totalorder %s222, %s223
    %p234 = scmp.eq.s32.totalorder %s20, 0
    %p235 = por %p233, %p234
    %p236 = scmp.ne.s32.totalorder %s222, %s223
    %p237 = scmp.eq.s32.totalorder %s21, 1
    %p238 = por %p236, %p237
    %p240 = scmp.ne.s32.totalorder %s223, %s239
    %p241 = scmp.eq.s32.totalorder %s21, 0
    %p242 = por %p240, %p241
    %p243 = scmp.le.s32.totalorder 1, %s15
    %p244 = scmp.lt.s32.totalorder %s15, 3
    %p245 = pnand %p243, %p244
    %p246 = pneg %p245
    // Predicated region
    $region9: #{samplenet_forward.1} parent=5 // pred_check
      _
    $region10: #{samplenet_forward.1} parent=5 // pred_check_branch
      %248 = sbr.rel (%p245) target = $region12
    $region11: #{samplenet_forward.1} parent=5 // pred_region
      %s249 = ssub.s32 %s15, 1
      // Predicated region
      $region13: #{samplenet_forward.1} parent=11 // pred_check
        %p250 = pneg %p62
      $region14: #{samplenet_forward.1} parent=11 // pred_check_branch
        %252 = sbr.rel (%p250) target = $region16
      $region15: #{samplenet_forward.1} parent=11 // pred_region
        _
      $region16: #{samplenet_forward.1} parent=11 // pred_fallthru
        _
      // Predicated region
      $region17: #{samplenet_forward.1} parent=11 // pred_check
        %p253 = pneg %p83
      $region18: #{samplenet_forward.1} parent=11 // pred_check_branch
        %255 = sbr.rel (%p253) target = $region20
      $region19: #{samplenet_forward.1} parent=11 // pred_region
        _
      $region20: #{samplenet_forward.1} parent=11 // pred_fallthru
        _
      // Predicated region
      $region21: #{samplenet_forward.1} parent=11 // pred_check
        %p256 = pneg %p104
      $region22: #{samplenet_forward.1} parent=11 // pred_check_branch
        %258 = sbr.rel (%p256) target = $region24
      $region23: #{samplenet_forward.1} parent=11 // pred_region
        _
      $region24: #{samplenet_forward.1} parent=11 // pred_fallthru
        _
      // Predicated region
      $region25: #{samplenet_forward.1} parent=11 // pred_check
        %p259 = pneg %p125
      $region26: #{samplenet_forward.1} parent=11 // pred_check_branch
        %261 = sbr.rel (%p259) target = $region28
      $region27: #{samplenet_forward.1} parent=11 // pred_region
        _
      $region28: #{samplenet_forward.1} parent=11 // pred_fallthru
        _
      // Predicated region
      $region29: #{samplenet_forward.1} parent=11 // pred_check
        %p262 = pneg %p146
      $region30: #{samplenet_forward.1} parent=11 // pred_check_branch
        %264 = sbr.rel (%p262) target = $region32
      $region31: #{samplenet_forward.1} parent=11 // pred_region
        _
      $region32: #{samplenet_forward.1} parent=11 // pred_fallthru
        _
      // Predicated region
      $region33: #{samplenet_forward.1} parent=11 // pred_check
        %p265 = pneg %p167
      $region34: #{samplenet_forward.1} parent=11 // pred_check_branch
        %267 = sbr.rel (%p265) target = $region36
      $region35: #{samplenet_forward.1} parent=11 // pred_region
        _
      $region36: #{samplenet_forward.1} parent=11 // pred_fallthru
        _
      // Predicated region
      $region37: #{samplenet_forward.1} parent=11 // pred_check
        %p268 = pneg %p188
      $region38: #{samplenet_forward.1} parent=11 // pred_check_branch
        %270 = sbr.rel (%p268) target = $region40
      $region39: #{samplenet_forward.1} parent=11 // pred_region
        _
      $region40: #{samplenet_forward.1} parent=11 // pred_fallthru
        _
      // Predicated region
      $region41: #{samplenet_forward.1} parent=11 // pred_check
        %p271 = pneg %p209
      $region42: #{samplenet_forward.1} parent=11 // pred_check_branch
        %273 = sbr.rel (%p271) target = $region44
      $region43: #{samplenet_forward.1} parent=11 // pred_region
        _
      $region44: #{samplenet_forward.1} parent=11 // pred_fallthru
        _
    $region12: #{samplenet_forward.1} parent=5 // pred_fallthru
      _
    %p274 = scmp.lt.s32.totalorder %s15, 2
    // Predicated region
    $region45: #{samplenet_forward.1} parent=5 // pred_check
      %p275 = pneg %p274
    $region46: #{samplenet_forward.1} parent=5 // pred_check_branch
      %277 = sbr.rel (%p275) target = $region48
    $region47: #{samplenet_forward.1} parent=5 // pred_region
      // Predicated region
      $region49: #{samplenet_forward.1} parent=47 // pred_check
        %p278 = pneg %p35
      $region50: #{samplenet_forward.1} parent=47 // pred_check_branch
        %280 = sbr.rel (%p278) target = $region52
      $region51: #{samplenet_forward.1} parent=47 // pred_region
        %s281 = smul.u32 4, %s15
        %p282 = scmp.lt.s32.totalorder %s281, 7
        %s283 = scalar_select %p282, %s281, 7
        %s284 = smul.addr %s283, 4
        %s285 = scalar_lea.vmem %s0, %s284
        %s286 = smul.u32 4, %s15
      $region52: #{samplenet_forward.1} parent=47 // pred_fallthru
        _
    $region48: #{samplenet_forward.1} parent=5 // pred_fallthru
      _
    %p287 = scmp.le.s32.totalorder 1, %s15
    %p288 = scmp.lt.s32.totalorder %s15, 3
    %p289 = pnand %p287, %p288
    %p290 = pneg %p289
    // Predicated region
    $region53: #{samplenet_forward.1} parent=5 // pred_check
      _
    $region54: #{samplenet_forward.1} parent=5 // pred_check_branch
      %292 = sbr.rel (%p289) target = $region56
    $region55: #{samplenet_forward.1} parent=5 // pred_region
      %s293 = ssub.s32 %s15, 1
      %s294 = smul.u32 4, %s20
      %p295 = scmp.lt.s32.totalorder %s294, 7
      %s296 = scalar_select %p295, %s294, 7
      %s297 = smul.addr %s296, 4
      %s298 = scalar_lea.vmem %s0, %s297
      %p299 = pneg %p41
      %p300 = pneg %p38
      %p301 = pneg %p62
      %p302 = pneg %p59
      %p303 = pneg %p83
      %p304 = pneg %p80
      %p305 = pneg %p104
      %p306 = pneg %p101
      %p307 = pneg %p125
      %p308 = pneg %p122
      %p309 = pneg %p146
      %p310 = pneg %p143
      %p311 = pneg %p167
      %p312 = pneg %p164
      %p313 = pneg %p188
      %p314 = pneg %p185
      %p315 = pneg %p209
      %p316 = pneg %p206
      %p317 = pneg %p235
      %p318 = pneg %p232
      %s319 = smul.u32 4, %s20
      %p320 = scmp.lt.s32.totalorder %s319, 7
      %s321 = scalar_select %p320, %s319, 7
      %s322 = smul.addr %s321, 8
      %s323 = scalar_lea.vmem %s9, %s322
      %s324 = smul.u32 4, %s20
      %p325 = scmp.lt.s32.totalorder %s324, 7
      %s326 = scalar_select %p325, %s324, 7
      %s327 = smul.addr %s326, 4
      %s328 = scalar_lea.vmem %s0, %s327
      %s329 = smul.u32 4, %s20
      %s330 = smul.u32 4, %s20
      %p331 = scmp.lt.s32.totalorder %s330, 7
      %s332 = scalar_select %p331, %s330, 7
      %s333 = smul.addr %s332, 8
      %s334 = scalar_lea.vmem %s9, %s333
      %s335 = smul.u32 4, %s20
      %v337 = vld [vmem:[%s328] sm:$0xff]
      %v338 = vld [vmem:[%s328 + $0x8] sm:$0xff]
      %v339 = vld [vmem:[%s1] sm:$0xf]
      %v340 = vld [vmem:[%s1 + $0x4] sm:$0xf]
      %v341 = vld [vmem:[%s1 + $0x8] sm:$0xf]
      %v342 = vld [vmem:[%s1 + $0xc] sm:$0xf]
      %v343 = vld [vmem:[%s1 + $0x10] sm:$0xf]
      %v344 = vld [vmem:[%s1 + $0x14] sm:$0xf]
      %v345 = vld [vmem:[%s1 + $0x18] sm:$0xf]
      %v346 = vld [vmem:[%s1 + $0x1c] sm:$0xf]
      %v347 = vld [vmem:[%s1 + $0x20] sm:$0xf]
      %v348 = vld [vmem:[%s1 + $0x24] sm:$0xf]
      %v349 = vld [vmem:[%s1 + $0x28] sm:$0xf]
      %v350 = vld [vmem:[%s1 + $0x2c] sm:$0xf]
      %v351 = vld [vmem:[%s1 + $0x30] sm:$0xf]
      %v352 = vld [vmem:[%s1 + $0x34] sm:$0xf]
      %v353 = vld [vmem:[%s1 + $0x38] sm:$0xf]
      %v354 = vld [vmem:[%s1 + $0x3c] sm:$0xf]
      %v355 = vld [vmem:[%s2] sm:$0xff]
      %v356 = vld [vmem:[%s2 + $0x8] sm:$0xff]
      %v357 = vld [vmem:[%s2 + $0x10] sm:$0xff]
      %v358 = vld [vmem:[%s2 + $0x18] sm:$0xff]
      %v359 = vld [vmem:[%s2 + $0x20] sm:$0xff]
      %v360 = vld [vmem:[%s2 + $0x28] sm:$0xff]
      %v361 = vld [vmem:[%s2 + $0x30] sm:$0xff]
      %v362 = vld [vmem:[%s2 + $0x38] sm:$0xff]
      %v363 = vld [vmem:[%s2 + $0x40] sm:$0xff]
      %v364 = vld [vmem:[%s2 + $0x48] sm:$0xff]
      %v365 = vld [vmem:[%s2 + $0x50] sm:$0xff]
      %v366 = vld [vmem:[%s2 + $0x58] sm:$0xff]
      %v367 = vld [vmem:[%s2 + $0x60] sm:$0xff]
      %v368 = vld [vmem:[%s2 + $0x68] sm:$0xff]
      %v369 = vld [vmem:[%s2 + $0x70] sm:$0xff]
      %v370 = vld [vmem:[%s2 + $0x78] sm:$0xff]
      %372 = vset.pattern.permute.xlu0 0
      %373 = vperm.xlu0 %372, %v355
      %v374 = vpop.permute.xlu0 %373
      %377 = vset.pattern.permute.xlu0 0
      %378 = vperm.xlu0 %377, %v356
      %v379 = vpop.permute.xlu0 %378
      %382 = vset.pattern.permute.xlu0 0
      %383 = vperm.xlu0 %382, %v357
      %v384 = vpop.permute.xlu0 %383
      %387 = vset.pattern.permute.xlu0 0
      %388 = vperm.xlu0 %387, %v358
      %v389 = vpop.permute.xlu0 %388
      %392 = vset.pattern.permute.xlu0 0
      %393 = vperm.xlu0 %392, %v359
      %v394 = vpop.permute.xlu0 %393
      %397 = vset.pattern.permute.xlu0 0
      %398 = vperm.xlu0 %397, %v360
      %v399 = vpop.permute.xlu0 %398
      %402 = vset.pattern.permute.xlu0 0
      %403 = vperm.xlu0 %402, %v361
      %v404 = vpop.permute.xlu0 %403
      %407 = vset.pattern.permute.xlu0 0
      %408 = vperm.xlu0 %407, %v362
      %v409 = vpop.permute.xlu0 %408
      %412 = vset.pattern.permute.xlu0 0
      %413 = vperm.xlu0 %412, %v363
      %v414 = vpop.permute.xlu0 %413
      %417 = vset.pattern.permute.xlu0 0
      %418 = vperm.xlu0 %417, %v364
      %v419 = vpop.permute.xlu0 %418
      %422 = vset.pattern.permute.xlu0 0
      %423 = vperm.xlu0 %422, %v365
      %v424 = vpop.permute.xlu0 %423
      %427 = vset.pattern.permute.xlu0 0
      %428 = vperm.xlu0 %427, %v366
      %v429 = vpop.permute.xlu0 %428
      %432 = vset.pattern.permute.xlu0 0
      %433 = vperm.xlu0 %432, %v367
      %v434 = vpop.permute.xlu0 %433
      %437 = vset.pattern.permute.xlu0 0
      %438 = vperm.xlu0 %437, %v368
      %v439 = vpop.permute.xlu0 %438
      %442 = vset.pattern.permute.xlu0 0
      %443 = vperm.xlu0 %442, %v369
      %v444 = vpop.permute.xlu0 %443
      %447 = vset.pattern.permute.xlu0 0
      %448 = vperm.xlu0 %447, %v370
      %v449 = vpop.permute.xlu0 %448
      %v467 = vunpack.c.l.b16 %v339
      %v468 = vunpack.c.l.b16 %v340
      %v469 = vunpack.c.l.b16 %v341
      %v470 = vunpack.c.l.b16 %v342
      %v471 = vunpack.c.l.b16 %v343
      %v472 = vunpack.c.l.b16 %v344
      %v473 = vunpack.c.l.b16 %v345
      %v474 = vunpack.c.l.b16 %v346
      %v475 = vunpack.c.l.b16 %v347
      %v476 = vunpack.c.l.b16 %v348
      %v477 = vunpack.c.l.b16 %v349
      %v478 = vunpack.c.l.b16 %v350
      %v479 = vunpack.c.l.b16 %v351
      %v480 = vunpack.c.l.b16 %v352
      %v481 = vunpack.c.l.b16 %v353
      %v482 = vunpack.c.l.b16 %v354
      %v483 = vpack.c.b16 %v468, %v467
      %v484 = vpack.c.b16 %v470, %v469
      %v485 = vpack.c.b16 %v472, %v471
      %v486 = vpack.c.b16 %v474, %v473
      %v487 = vpack.c.b16 %v476, %v475
      %v488 = vpack.c.b16 %v478, %v477
      %v489 = vpack.c.b16 %v480, %v479
      %v490 = vpack.c.b16 %v482, %v481
      %v493 = vunpack.c.l.b16 %v337
      %v494 = vunpack.c.h.b16 %v337
      %v495 = vunpack.c.l.b16 %v338
      %v496 = vunpack.c.h.b16 %v338
      %v497 = vpack.c.b16 %v493, %v493
      %v498 = vpack.c.b16 %v494, %v494
      %v499 = vpack.c.b16 %v495, %v495
      %v500 = vpack.c.b16 %v496, %v496
      %vm501 = vcmask 64512
      %v503 = vsel %vm501, %v483, 0
      %v506 = vsel %vm501, %v484, 0
      %v509 = vsel %vm501, %v485, 0
      %v512 = vsel %vm501, %v486, 0
      %v515 = vsel %vm501, %v487, 0
      %v518 = vsel %vm501, %v488, 0
      %v521 = vsel %vm501, %v489, 0
      %v524 = vsel %vm501, %v490, 0
      %vm526 = vcmask 1043456
      %v528 = vsel %vm526, %v497, 0
      %v531 = vsel %vm526, %v498, 0
      %v534 = vsel %vm526, %v499, 0
      %v537 = vsel %vm526, %v500, 0
      %539 = vmatprep.subr.bf16.mxu0 %v531
      %540 = vmatpush1.bf16.msra.mxu0 %v528
      %541 = vmatprep.subr.bf16.mxu0 0
      %542 = vmatpush1.bf16.msra.mxu0 0
      %543 = vmatprep.subr.bf16.mxu0 0
      %544 = vmatpush1.bf16.msra.mxu0 0
      %545 = vmatprep.subr.bf16.mxu0 0
      %546 = vmatpush1.bf16.msra.mxu0 0
      %547 = vmatprep.subr.bf16.mxu0 0
      %548 = vmatpush1.bf16.msra.mxu0 0
      %549 = vmatprep.subr.bf16.mxu0 0
      %550 = vmatpush1.bf16.msra.mxu0 0
      %551 = vmatprep.subr.bf16.mxu0 0
      %552 = vmatpush1.bf16.msra.mxu0 0
      %553 = vmatprep.subr.bf16.mxu0 0
      %554 = vmatpush1.bf16.msra.mxu0 0
      %555 = vmatprep.subr.bf16.mxu0 0
      %556 = vmatpush1.bf16.msra.mxu0 0
      %557 = vmatprep.subr.bf16.mxu0 0
      %558 = vmatpush1.bf16.msra.mxu0 0
      %559 = vmatprep.subr.bf16.mxu0 0
      %560 = vmatpush1.bf16.msra.mxu0 0
      %561 = vmatprep.subr.bf16.mxu0 0
      %562 = vmatpush1.bf16.msra.mxu0 0
      %563 = vmatprep.subr.bf16.mxu0 0
      %564 = vmatpush1.bf16.msra.mxu0 0
      %565 = vmatprep.subr.bf16.mxu0 0
      %566 = vmatpush1.bf16.msra.mxu0 0
      %567 = vmatprep.subr.bf16.mxu0 0
      %568 = vmatpush1.bf16.msra.mxu0 0
      %569 = vmatprep.subr.bf16.mxu0 0
      %570 = vmatpush1.bf16.msra.mxu0 0
      %571 = vmatprep.mubr.bf16.mxu0 0
      %572 = vmatmul.mubr.bf16.gmra.mrb[0].mxu0 %v503
      %v573 = vpop.f32.mrb[0].mxu0
      %v574 = vadd.f32 %v374, %v573
      %v575 = vpop.f32.mrb[0].mxu0
      %v576 = vadd.f32 %v374, %v575
      %v577 = vpop.f32.mrb[0].mxu0
      %v578 = vadd.f32 %v379, %v577
      %v579 = vpop.f32.mrb[0].mxu0
      %v580 = vadd.f32 %v379, %v579
      %581 = vmatprep.mubr.bf16.mxu0 0
      %582 = vmatmul.mubr.bf16.gmra.mrb[0].mxu0 %v506
      %v583 = vpop.f32.mrb[0].mxu0
      %v584 = vadd.f32 %v384, %v583
      %v585 = vpop.f32.mrb[0].mxu0
      %v586 = vadd.f32 %v384, %v585
      %v587 = vpop.f32.mrb[0].mxu0
      %v588 = vadd.f32 %v389, %v587
      %v589 = vpop.f32.mrb[0].mxu0
      %v590 = vadd.f32 %v389, %v589
      %591 = vmatprep.mubr.bf16.mxu0 0
      %592 = vmatmul.mubr.bf16.gmra.mrb[0].mxu0 %v509
      %v593 = vpop.f32.mrb[0].mxu0
      %v594 = vadd.f32 %v394, %v593
      %v595 = vpop.f32.mrb[0].mxu0
      %v596 = vadd.f32 %v394, %v595
      %v597 = vpop.f32.mrb[0].mxu0
      %v598 = vadd.f32 %v399, %v597
      %v599 = vpop.f32.mrb[0].mxu0
      %v600 = vadd.f32 %v399, %v599
      %601 = vmatprep.mubr.bf16.mxu0 0
      %602 = vmatmul.mubr.bf16.gmra.mrb[0].mxu0 %v512
      %v603 = vpop.f32.mrb[0].mxu0
      %v604 = vadd.f32 %v404, %v603
      %v605 = vpop.f32.mrb[0].mxu0
      %v606 = vadd.f32 %v404, %v605
      %v607 = vpop.f32.mrb[0].mxu0
      %v608 = vadd.f32 %v409, %v607
      %v609 = vpop.f32.mrb[0].mxu0
      %v610 = vadd.f32 %v409, %v609
      %611 = vmatprep.mubr.bf16.mxu0 0
      %612 = vmatmul.mubr.bf16.gmra.mrb[0].mxu0 %v515
      %v613 = vpop.f32.mrb[0].mxu0
      %v614 = vadd.f32 %v414, %v613
      %v615 = vpop.f32.mrb[0].mxu0
      %v616 = vadd.f32 %v414, %v615
      %v617 = vpop.f32.mrb[0].mxu0
      %v618 = vadd.f32 %v419, %v617
      %v619 = vpop.f32.mrb[0].mxu0
      %v620 = vadd.f32 %v419, %v619
      %621 = vmatprep.mubr.bf16.mxu0 0
      %622 = vmatmul.mubr.bf16.gmra.mrb[0].mxu0 %v518
      %v623 = vpop.f32.mrb[0].mxu0
      %v624 = vadd.f32 %v424, %v623
      %v625 = vpop.f32.mrb[0].mxu0
      %v626 = vadd.f32 %v424, %v625
      %v627 = vpop.f32.mrb[0].mxu0
      %v628 = vadd.f32 %v429, %v627
      %v629 = vpop.f32.mrb[0].mxu0
      %v630 = vadd.f32 %v429, %v629
      %631 = vmatprep.mubr.bf16.mxu0 0
      %632 = vmatmul.mubr.bf16.gmra.mrb[0].mxu0 %v521
      %v633 = vpop.f32.mrb[0].mxu0
      %v634 = vadd.f32 %v434, %v633
      %v635 = vpop.f32.mrb[0].mxu0
      %v636 = vadd.f32 %v434, %v635
      %v637 = vpop.f32.mrb[0].mxu0
      %v638 = vadd.f32 %v439, %v637
      %v639 = vpop.f32.mrb[0].mxu0
      %v640 = vadd.f32 %v439, %v639
      %641 = vmatprep.mubr.bf16.mxu0 0
      %642 = vmatmul.mubr.bf16.gmra.mrb[0].mxu0 %v524
      %v643 = vpop.f32.mrb[0].mxu0
      %v644 = vadd.f32 %v444, %v643
      %v645 = vpop.f32.mrb[0].mxu0
      %v646 = vadd.f32 %v444, %v645
      %v647 = vpop.f32.mrb[0].mxu0
      %v648 = vadd.f32 %v449, %v647
      %v649 = vpop.f32.mrb[0].mxu0
      %v650 = vadd.f32 %v449, %v649
      %651 = vdwg.mxu0
      %652 = vmatprep.subr.bf16.mxu0 %v537
      %653 = vmatpush1.bf16.msra.mxu0 %v534
      %654 = vmatprep.subr.bf16.mxu0 0
      %655 = vmatpush1.bf16.msra.mxu0 0
      %656 = vmatprep.subr.bf16.mxu0 0
      %657 = vmatpush1.bf16.msra.mxu0 0
      %658 = vmatprep.subr.bf16.mxu0 0
      %659 = vmatpush1.bf16.msra.mxu0 0
      %660 = vmatprep.subr.bf16.mxu0 0
      %661 = vmatpush1.bf16.msra.mxu0 0
      %662 = vmatprep.subr.bf16.mxu0 0
      %663 = vmatpush1.bf16.msra.mxu0 0
      %664 = vmatprep.subr.bf16.mxu0 0
      %665 = vmatpush1.bf16.msra.mxu0 0
      %666 = vmatprep.subr.bf16.mxu0 0
      %667 = vmatpush1.bf16.msra.mxu0 0
      %668 = vmatprep.subr.bf16.mxu0 0
      %669 = vmatpush1.bf16.msra.mxu0 0
      %670 = vmatprep.subr.bf16.mxu0 0
      %671 = vmatpush1.bf16.msra.mxu0 0
      %672 = vmatprep.subr.bf16.mxu0 0
      %673 = vmatpush1.bf16.msra.mxu0 0
      %674 = vmatprep.subr.bf16.mxu0 0
      %675 = vmatpush1.bf16.msra.mxu0 0
      %676 = vmatprep.subr.bf16.mxu0 0
      %677 = vmatpush1.bf16.msra.mxu0 0
      %678 = vmatprep.subr.bf16.mxu0 0
      %679 = vmatpush1.bf16.msra.mxu0 0
      %680 = vmatprep.subr.bf16.mxu0 0
      %681 = vmatpush1.bf16.msra.mxu0 0
      %682 = vmatprep.subr.bf16.mxu0 0
      %683 = vmatpush1.bf16.msra.mxu0 0
      %684 = vmatprep.mubr.bf16.mxu0 0
      %685 = vmatmul.mubr.bf16.gmra.mrb[0].mxu0 %v503
      %v686 = vpop.f32.mrb[0].mxu0
      %v687 = vadd.f32 %v374, %v686
      %v688 = vpop.f32.mrb[0].mxu0
      %v689 = vadd.f32 %v374, %v688
      %v690 = vpop.f32.mrb[0].mxu0
      %v691 = vadd.f32 %v379, %v690
      %v692 = vpop.f32.mrb[0].mxu0
      %v693 = vadd.f32 %v379, %v692
      %694 = vmatprep.mubr.bf16.mxu0 0
      %695 = vmatmul.mubr.bf16.gmra.mrb[0].mxu0 %v506
      %v696 = vpop.f32.mrb[0].mxu0
      %v697 = vadd.f32 %v384, %v696
      %v698 = vpop.f32.mrb[0].mxu0
      %v699 = vadd.f32 %v384, %v698
      %v700 = vpop.f32.mrb[0].mxu0
      %v701 = vadd.f32 %v389, %v700
      %v702 = vpop.f32.mrb[0].mxu0
      %v703 = vadd.f32 %v389, %v702
      %704 = vmatprep.mubr.bf16.mxu0 0
      %705 = vmatmul.mubr.bf16.gmra.mrb[0].mxu0 %v509
      %v706 = vpop.f32.mrb[0].mxu0
      %v707 = vadd.f32 %v394, %v706
      %v708 = vpop.f32.mrb[0].mxu0
      %v709 = vadd.f32 %v394, %v708
      %v710 = vpop.f32.mrb[0].mxu0
      %v711 = vadd.f32 %v399, %v710
      %v712 = vpop.f32.mrb[0].mxu0
      %v713 = vadd.f32 %v399, %v712
      %714 = vmatprep.mubr.bf16.mxu0 0
      %715 = vmatmul.mubr.bf16.gmra.mrb[0].mxu0 %v512
      %v716 = vpop.f32.mrb[0].mxu0
      %v717 = vadd.f32 %v404, %v716
      %v718 = vpop.f32.mrb[0].mxu0
      %v719 = vadd.f32 %v404, %v718
      %v720 = vpop.f32.mrb[0].mxu0
      %v721 = vadd.f32 %v409, %v720
      %v722 = vpop.f32.mrb[0].mxu0
      %v723 = vadd.f32 %v409, %v722
      %724 = vmatprep.mubr.bf16.mxu0 0
      %725 = vmatmul.mubr.bf16.gmra.mrb[0].mxu0 %v515
      %v726 = vpop.f32.mrb[0].mxu0
      %v727 = vadd.f32 %v414, %v726
      %v728 = vpop.f32.mrb[0].mxu0
      %v729 = vadd.f32 %v414, %v728
      %v730 = vpop.f32.mrb[0].mxu0
      %v731 = vadd.f32 %v419, %v730
      %v732 = vpop.f32.mrb[0].mxu0
      %v733 = vadd.f32 %v419, %v732
      %734 = vmatprep.mubr.bf16.mxu0 0
      %735 = vmatmul.mubr.bf16.gmra.mrb[0].mxu0 %v518
      %v736 = vpop.f32.mrb[0].mxu0
      %v737 = vadd.f32 %v424, %v736
      %v738 = vpop.f32.mrb[0].mxu0
      %v739 = vadd.f32 %v424, %v738
      %v740 = vpop.f32.mrb[0].mxu0
      %v741 = vadd.f32 %v429, %v740
      %v742 = vpop.f32.mrb[0].mxu0
      %v743 = vadd.f32 %v429, %v742
      %744 = vmatprep.mubr.bf16.mxu0 0
      %745 = vmatmul.mubr.bf16.gmra.mrb[0].mxu0 %v521
      %v746 = vpop.f32.mrb[0].mxu0
      %v747 = vadd.f32 %v434, %v746
      %v748 = vpop.f32.mrb[0].mxu0
      %v749 = vadd.f32 %v434, %v748
      %v750 = vpop.f32.mrb[0].mxu0
      %v751 = vadd.f32 %v439, %v750
      %v752 = vpop.f32.mrb[0].mxu0
      %v753 = vadd.f32 %v439, %v752
      %754 = vmatprep.mubr.bf16.mxu0 0
      %755 = vmatmul.mubr.bf16.gmra.mrb[0].mxu0 %v524
      %v756 = vpop.f32.mrb[0].mxu0
      %v757 = vadd.f32 %v444, %v756
      %v758 = vpop.f32.mrb[0].mxu0
      %v759 = vadd.f32 %v444, %v758
      %v760 = vpop.f32.mrb[0].mxu0
      %v761 = vadd.f32 %v449, %v760
      %v762 = vpop.f32.mrb[0].mxu0
      %v763 = vadd.f32 %v449, %v762
      %764 = vdwg.mxu0
      %v765 = vmax.f32 %v574, 0.0
      %v766 = vmax.f32 %v576, 0.0
      %v767 = vmax.f32 %v687, 0.0
      %v768 = vmax.f32 %v689, 0.0
      %v769 = vmax.f32 %v578, 0.0
      %v770 = vmax.f32 %v580, 0.0
      %v771 = vmax.f32 %v691, 0.0
      %v772 = vmax.f32 %v693, 0.0
      %v773 = vmax.f32 %v584, 0.0
      %v774 = vmax.f32 %v586, 0.0
      %v775 = vmax.f32 %v697, 0.0
      %v776 = vmax.f32 %v699, 0.0
      %v777 = vmax.f32 %v588, 0.0
      %v778 = vmax.f32 %v590, 0.0
      %v779 = vmax.f32 %v701, 0.0
      %v780 = vmax.f32 %v703, 0.0
      %v781 = vmax.f32 %v594, 0.0
      %v782 = vmax.f32 %v596, 0.0
      %v783 = vmax.f32 %v707, 0.0
      %v784 = vmax.f32 %v709, 0.0
      %v785 = vmax.f32 %v598, 0.0
      %v786 = vmax.f32 %v600, 0.0
      %v787 = vmax.f32 %v711, 0.0
      %v788 = vmax.f32 %v713, 0.0
      %v789 = vmax.f32 %v604, 0.0
      %v790 = vmax.f32 %v606, 0.0
      %v791 = vmax.f32 %v717, 0.0
      %v792 = vmax.f32 %v719, 0.0
      %v793 = vmax.f32 %v608, 0.0
      %v794 = vmax.f32 %v610, 0.0
      %v795 = vmax.f32 %v721, 0.0
      %v796 = vmax.f32 %v723, 0.0
      %v797 = vmax.f32 %v614, 0.0
      %v798 = vmax.f32 %v616, 0.0
      %v799 = vmax.f32 %v727, 0.0
      %v800 = vmax.f32 %v729, 0.0
      %v801 = vmax.f32 %v618, 0.0
      %v802 = vmax.f32 %v620, 0.0
      %v803 = vmax.f32 %v731, 0.0
      %v804 = vmax.f32 %v733, 0.0
      %v805 = vmax.f32 %v624, 0.0
      %v806 = vmax.f32 %v626, 0.0
      %v807 = vmax.f32 %v737, 0.0
      %v808 = vmax.f32 %v739, 0.0
      %v809 = vmax.f32 %v628, 0.0
      %v810 = vmax.f32 %v630, 0.0
      %v811 = vmax.f32 %v741, 0.0
      %v812 = vmax.f32 %v743, 0.0
      %v813 = vmax.f32 %v634, 0.0
      %v814 = vmax.f32 %v636, 0.0
      %v815 = vmax.f32 %v747, 0.0
      %v816 = vmax.f32 %v749, 0.0
      %v817 = vmax.f32 %v638, 0.0
      %v818 = vmax.f32 %v640, 0.0
      %v819 = vmax.f32 %v751, 0.0
      %v820 = vmax.f32 %v753, 0.0
      %v821 = vmax.f32 %v644, 0.0
      %v822 = vmax.f32 %v646, 0.0
      %v823 = vmax.f32 %v757, 0.0
      %v824 = vmax.f32 %v759, 0.0
      %v825 = vmax.f32 %v648, 0.0
      %v826 = vmax.f32 %v650, 0.0
      %v827 = vmax.f32 %v761, 0.0
      %v828 = vmax.f32 %v763, 0.0
      %v829 = vpack.c.bf16 %v769, %v765
      %v830 = vpack.c.bf16 %v770, %v766
      %v831 = vpack.c.bf16 %v771, %v767
      %v832 = vpack.c.bf16 %v772, %v768
      %v833 = vpack.c.bf16 %v777, %v773
      %v834 = vpack.c.bf16 %v778, %v774
      %v835 = vpack.c.bf16 %v779, %v775
      %v836 = vpack.c.bf16 %v780, %v776
      %v837 = vpack.c.bf16 %v785, %v781
      %v838 = vpack.c.bf16 %v786, %v782
      %v839 = vpack.c.bf16 %v787, %v783
      %v840 = vpack.c.bf16 %v788, %v784
      %v841 = vpack.c.bf16 %v793, %v789
      %v842 = vpack.c.bf16 %v794, %v790
      %v843 = vpack.c.bf16 %v795, %v791
      %v844 = vpack.c.bf16 %v796, %v792
      %v845 = vpack.c.bf16 %v801, %v797
      %v846 = vpack.c.bf16 %v802, %v798
      %v847 = vpack.c.bf16 %v803, %v799
      %v848 = vpack.c.bf16 %v804, %v800
      %v849 = vpack.c.bf16 %v809, %v805
      %v850 = vpack.c.bf16 %v810, %v806
      %v851 = vpack.c.bf16 %v811, %v807
      %v852 = vpack.c.bf16 %v812, %v808
      %v853 = vpack.c.bf16 %v817, %v813
      %v854 = vpack.c.bf16 %v818, %v814
      %v855 = vpack.c.bf16 %v819, %v815
      %v856 = vpack.c.bf16 %v820, %v816
      %v857 = vpack.c.bf16 %v825, %v821
      %v858 = vpack.c.bf16 %v826, %v822
      %v859 = vpack.c.bf16 %v827, %v823
      %v860 = vpack.c.bf16 %v828, %v824
      %v861 = vld [vmem:[%s3] sm:$0xf]
      %v862 = vld [vmem:[%s3 + $0x4] sm:$0xf]
      %v863 = vld [vmem:[%s3 + $0x8] sm:$0xf]
      %v864 = vld [vmem:[%s3 + $0xc] sm:$0xf]
      %v865 = vld [vmem:[%s3 + $0x10] sm:$0xf]
      %v866 = vld [vmem:[%s3 + $0x14] sm:$0xf]
      %v867 = vld [vmem:[%s3 + $0x18] sm:$0xf]
      %v868 = vld [vmem:[%s3 + $0x1c] sm:$0xf]
      %v869 = vld [vmem:[%s3 + $0x20] sm:$0xf]
      %v870 = vld [vmem:[%s3 + $0x24] sm:$0xf]
      %v871 = vld [vmem:[%s3 + $0x28] sm:$0xf]
      %v872 = vld [vmem:[%s3 + $0x2c] sm:$0xf]
      %v873 = vld [vmem:[%s3 + $0x30] sm:$0xf]
      %v874 = vld [vmem:[%s3 + $0x34] sm:$0xf]
      %v875 = vld [vmem:[%s3 + $0x38] sm:$0xf]
      %v876 = vld [vmem:[%s3 + $0x3c] sm:$0xf]
      %v877 = vld [vmem:[%s4] sm:$0xff]
      %v878 = vld [vmem:[%s4 + $0x8] sm:$0xff]
      %v879 = vld [vmem:[%s4 + $0x10] sm:$0xff]
      %v880 = vld [vmem:[%s4 + $0x18] sm:$0xff]
      %v881 = vld [vmem:[%s4 + $0x20] sm:$0xff]
      %v882 = vld [vmem:[%s4 + $0x28] sm:$0xff]
      %v883 = vld [vmem:[%s4 + $0x30] sm:$0xff]
      %v884 = vld [vmem:[%s4 + $0x38] sm:$0xff]
      %v885 = vld [vmem:[%s4 + $0x40] sm:$0xff]
      %v886 = vld [vmem:[%s4 + $0x48] sm:$0xff]
      %v887 = vld [vmem:[%s4 + $0x50] sm:$0xff]
      %v888 = vld [vmem:[%s4 + $0x58] sm:$0xff]
      %v889 = vld [vmem:[%s4 + $0x60] sm:$0xff]
      %v890 = vld [vmem:[%s4 + $0x68] sm:$0xff]
      %v891 = vld [vmem:[%s4 + $0x70] sm:$0xff]
      %v892 = vld [vmem:[%s4 + $0x78] sm:$0xff]
      %894 = vset.pattern.permute.xlu0 0
      %895 = vperm.xlu0 %894, %v877
      %v896 = vpop.permute.xlu0 %895
      %899 = vset.pattern.permute.xlu0 0
      %900 = vperm.xlu0 %899, %v878
      %v901 = vpop.permute.xlu0 %900
      %904 = vset.pattern.permute.xlu0 0
      %905 = vperm.xlu0 %904, %v879
      %v906 = vpop.permute.xlu0 %905
      %909 = vset.pattern.permute.xlu0 0
      %910 = vperm.xlu0 %909, %v880
      %v911 = vpop.permute.xlu0 %910
      %914 = vset.pattern.permute.xlu0 0
      %915 = vperm.xlu0 %914, %v881
      %v916 = vpop.permute.xlu0 %915
      %919 = vset.pattern.permute.xlu0 0
      %920 = vperm.xlu0 %919, %v882
      %v921 = vpop.permute.xlu0 %920
      %924 = vset.pattern.permute.xlu0 0
      %925 = vperm.xlu0 %924, %v883
      %v926 = vpop.permute.xlu0 %925
      %929 = vset.pattern.permute.xlu0 0
      %930 = vperm.xlu0 %929, %v884
      %v931 = vpop.permute.xlu0 %930
      %934 = vset.pattern.permute.xlu0 0
      %935 = vperm.xlu0 %934, %v885
      %v936 = vpop.permute.xlu0 %935
      %939 = vset.pattern.permute.xlu0 0
      %940 = vperm.xlu0 %939, %v886
      %v941 = vpop.permute.xlu0 %940
      %944 = vset.pattern.permute.xlu0 0
      %945 = vperm.xlu0 %944, %v887
      %v946 = vpop.permute.xlu0 %945
      %949 = vset.pattern.permute.xlu0 0
      %950 = vperm.xlu0 %949, %v888
      %v951 = vpop.permute.xlu0 %950
      %954 = vset.pattern.permute.xlu0 0
      %955 = vperm.xlu0 %954, %v889
      %v956 = vpop.permute.xlu0 %955
      %959 = vset.pattern.permute.xlu0 0
      %960 = vperm.xlu0 %959, %v890
      %v961 = vpop.permute.xlu0 %960
      %964 = vset.pattern.permute.xlu0 0
      %965 = vperm.xlu0 %964, %v891
      %v966 = vpop.permute.xlu0 %965
      %969 = vset.pattern.permute.xlu0 0
      %970 = vperm.xlu0 %969, %v892
      %v971 = vpop.permute.xlu0 %970
      %v989 = vunpack.c.l.b16 %v861
      %v990 = vunpack.c.l.b16 %v862
      %v991 = vunpack.c.l.b16 %v863
      %v992 = vunpack.c.l.b16 %v864
      %v993 = vunpack.c.l.b16 %v865
      %v994 = vunpack.c.l.b16 %v866
      %v995 = vunpack.c.l.b16 %v867
      %v996 = vunpack.c.l.b16 %v868
      %v997 = vunpack.c.l.b16 %v869
      %v998 = vunpack.c.l.b16 %v870
      %v999 = vunpack.c.l.b16 %v871
      %v1000 = vunpack.c.l.b16 %v872
      %v1001 = vunpack.c.l.b16 %v873
      %v1002 = vunpack.c.l.b16 %v874
      %v1003 = vunpack.c.l.b16 %v875
      %v1004 = vunpack.c.l.b16 %v876
      %v1005 = vpack.c.b16 %v990, %v989
      %v1006 = vpack.c.b16 %v992, %v991
      %v1007 = vpack.c.b16 %v994, %v993
      %v1008 = vpack.c.b16 %v996, %v995
      %v1009 = vpack.c.b16 %v998, %v997
      %v1010 = vpack.c.b16 %v1000, %v999
      %v1011 = vpack.c.b16 %v1002, %v1001
      %v1012 = vpack.c.b16 %v1004, %v1003
      %1021 = vmatprep.subr.bf16.mxu0 %v830
      %1022 = vmatpush1.bf16.msra.mxu0 %v829
      %1023 = vmatprep.subr.bf16.mxu0 %v834
      %1024 = vmatpush1.bf16.msra.mxu0 %v833
      %1025 = vmatprep.subr.bf16.mxu0 %v838
      %1026 = vmatpush1.bf16.msra.mxu0 %v837
      %1027 = vmatprep.subr.bf16.mxu0 %v842
      %1028 = vmatpush1.bf16.msra.mxu0 %v841
      %1029 = vmatprep.subr.bf16.mxu0 %v846
      %1030 = vmatpush1.bf16.msra.mxu0 %v845
      %1031 = vmatprep.subr.bf16.mxu0 %v850
      %1032 = vmatpush1.bf16.msra.mxu0 %v849
      %1033 = vmatprep.subr.bf16.mxu0 %v854
      %1034 = vmatpush1.bf16.msra.mxu0 %v853
      %1035 = vmatprep.subr.bf16.mxu0 %v858
      %1036 = vmatpush1.bf16.msra.mxu0 %v857
      %1037 = vmatprep.subr.bf16.mxu0 0
      %1038 = vmatpush1.bf16.msra.mxu0 0
      %1039 = vmatprep.subr.bf16.mxu0 0
      %1040 = vmatpush1.bf16.msra.mxu0 0
      %1041 = vmatprep.subr.bf16.mxu0 0
      %1042 = vmatpush1.bf16.msra.mxu0 0
      %1043 = vmatprep.subr.bf16.mxu0 0
      %1044 = vmatpush1.bf16.msra.mxu0 0
      %1045 = vmatprep.subr.bf16.mxu0 0
      %1046 = vmatpush1.bf16.msra.mxu0 0
      %1047 = vmatprep.subr.bf16.mxu0 0
      %1048 = vmatpush1.bf16.msra.mxu0 0
      %1049 = vmatprep.subr.bf16.mxu0 0
      %1050 = vmatpush1.bf16.msra.mxu0 0
      %1051 = vmatprep.subr.bf16.mxu0 0
      %1052 = vmatpush1.bf16.msra.mxu0 0
      %1053 = vmatprep.mubr.bf16.mxu0 0
      %1054 = vmatmul.mubr.bf16.gmra.mrb[0].mxu0 %v1005
      %v1055 = vpop.f32.mrb[0].mxu0
      %v1056 = vadd.f32 %v896, %v1055
      %v1057 = vpop.f32.mrb[0].mxu0
      %v1058 = vadd.f32 %v896, %v1057
      %v1059 = vpop.f32.mrb[0].mxu0
      %v1060 = vadd.f32 %v901, %v1059
      %v1061 = vpop.f32.mrb[0].mxu0
      %v1062 = vadd.f32 %v901, %v1061
      %1063 = vmatprep.mubr.bf16.mxu0 0
      %1064 = vmatmul.mubr.bf16.gmra.mrb[0].mxu0 %v1006
      %v1065 = vpop.f32.mrb[0].mxu0
      %v1066 = vadd.f32 %v906, %v1065
      %v1067 = vpop.f32.mrb[0].mxu0
      %v1068 = vadd.f32 %v906, %v1067
      %v1069 = vpop.f32.mrb[0].mxu0
      %v1070 = vadd.f32 %v911, %v1069
      %v1071 = vpop.f32.mrb[0].mxu0
      %v1072 = vadd.f32 %v911, %v1071
      %1073 = vmatprep.mubr.bf16.mxu0 0
      %1074 = vmatmul.mubr.bf16.gmra.mrb[0].mxu0 %v1007
      %v1075 = vpop.f32.mrb[0].mxu0
      %v1076 = vadd.f32 %v916, %v1075
      %v1077 = vpop.f32.mrb[0].mxu0
      %v1078 = vadd.f32 %v916, %v1077
      %v1079 = vpop.f32.mrb[0].mxu0
      %v1080 = vadd.f32 %v921, %v1079
      %v1081 = vpop.f32.mrb[0].mxu0
      %v1082 = vadd.f32 %v921, %v1081
      %1083 = vmatprep.mubr.bf16.mxu0 0
      %1084 = vmatmul.mubr.bf16.gmra.mrb[0].mxu0 %v1008
      %v1085 = vpop.f32.mrb[0].mxu0
      %v1086 = vadd.f32 %v926, %v1085
      %v1087 = vpop.f32.mrb[0].mxu0
      %v1088 = vadd.f32 %v926, %v1087
      %v1089 = vpop.f32.mrb[0].mxu0
      %v1090 = vadd.f32 %v931, %v1089
      %v1091 = vpop.f32.mrb[0].mxu0
      %v1092 = vadd.f32 %v931, %v1091
      %1093 = vmatprep.mubr.bf16.mxu0 0
      %1094 = vmatmul.mubr.bf16.gmra.mrb[0].mxu0 %v1009
      %v1095 = vpop.f32.mrb[0].mxu0
      %v1096 = vadd.f32 %v936, %v1095
      %v1097 = vpop.f32.mrb[0].mxu0
      %v1098 = vadd.f32 %v936, %v1097
      %v1099 = vpop.f32.mrb[0].mxu0
      %v1100 = vadd.f32 %v941, %v1099
      %v1101 = vpop.f32.mrb[0].mxu0
      %v1102 = vadd.f32 %v941, %v1101
      %1103 = vmatprep.mubr.bf16.mxu0 0
      %1104 = vmatmul.mubr.bf16.gmra.mrb[0].mxu0 %v1010
      %v1105 = vpop.f32.mrb[0].mxu0
      %v1106 = vadd.f32 %v946, %v1105
      %v1107 = vpop.f32.mrb[0].mxu0
      %v1108 = vadd.f32 %v946, %v1107
      %v1109 = vpop.f32.mrb[0].mxu0
      %v1110 = vadd.f32 %v951, %v1109
      %v1111 = vpop.f32.mrb[0].mxu0
      %v1112 = vadd.f32 %v951, %v1111
      %1113 = vmatprep.mubr.bf16.mxu0 0
      %1114 = vmatmul.mubr.bf16.gmra.mrb[0].mxu0 %v1011
      %v1115 = vpop.f32.mrb[0].mxu0
      %v1116 = vadd.f32 %v956, %v1115
      %v1117 = vpop.f32.mrb[0].mxu0
      %v1118 = vadd.f32 %v956, %v1117
      %v1119 = vpop.f32.mrb[0].mxu0
      %v1120 = vadd.f32 %v961, %v1119
      %v1121 = vpop.f32.mrb[0].mxu0
      %v1122 = vadd.f32 %v961, %v1121
      %1123 = vmatprep.mubr.bf16.mxu0 0
      %1124 = vmatmul.mubr.bf16.gmra.mrb[0].mxu0 %v1012
      %v1125 = vpop.f32.mrb[0].mxu0
      %v1126 = vadd.f32 %v966, %v1125
      %v1127 = vpop.f32.mrb[0].mxu0
      %v1128 = vadd.f32 %v966, %v1127
      %v1129 = vpop.f32.mrb[0].mxu0
      %v1130 = vadd.f32 %v971, %v1129
      %v1131 = vpop.f32.mrb[0].mxu0
      %v1132 = vadd.f32 %v971, %v1131
      %1133 = vdwg.mxu0
      %1134 = vmatprep.subr.bf16.mxu0 %v832
      %1135 = vmatpush1.bf16.msra.mxu0 %v831
      %1136 = vmatprep.subr.bf16.mxu0 %v836
      %1137 = vmatpush1.bf16.msra.mxu0 %v835
      %1138 = vmatprep.subr.bf16.mxu0 %v840
      %1139 = vmatpush1.bf16.msra.mxu0 %v839
      %1140 = vmatprep.subr.bf16.mxu0 %v844
      %1141 = vmatpush1.bf16.msra.mxu0 %v843
      %1142 = vmatprep.subr.bf16.mxu0 %v848
      %1143 = vmatpush1.bf16.msra.mxu0 %v847
      %1144 = vmatprep.subr.bf16.mxu0 %v852
      %1145 = vmatpush1.bf16.msra.mxu0 %v851
      %1146 = vmatprep.subr.bf16.mxu0 %v856
      %1147 = vmatpush1.bf16.msra.mxu0 %v855
      %1148 = vmatprep.subr.bf16.mxu0 %v860
      %1149 = vmatpush1.bf16.msra.mxu0 %v859
      %1150 = vmatprep.subr.bf16.mxu0 0
      %1151 = vmatpush1.bf16.msra.mxu0 0
      %1152 = vmatprep.subr.bf16.mxu0 0
      %1153 = vmatpush1.bf16.msra.mxu0 0
      %1154 = vmatprep.subr.bf16.mxu0 0
      %1155 = vmatpush1.bf16.msra.mxu0 0
      %1156 = vmatprep.subr.bf16.mxu0 0
      %1157 = vmatpush1.bf16.msra.mxu0 0
      %1158 = vmatprep.subr.bf16.mxu0 0
      %1159 = vmatpush1.bf16.msra.mxu0 0
      %1160 = vmatprep.subr.bf16.mxu0 0
      %1161 = vmatpush1.bf16.msra.mxu0 0
      %1162 = vmatprep.subr.bf16.mxu0 0
      %1163 = vmatpush1.bf16.msra.mxu0 0
      %1164 = vmatprep.subr.bf16.mxu0 0
      %1165 = vmatpush1.bf16.msra.mxu0 0
      %1166 = vmatprep.mubr.bf16.mxu0 0
      %1167 = vmatmul.mubr.bf16.gmra.mrb[0].mxu0 %v1005
      %v1168 = vpop.f32.mrb[0].mxu0
      %v1169 = vadd.f32 %v896, %v1168
      %v1170 = vpop.f32.mrb[0].mxu0
      %v1171 = vadd.f32 %v896, %v1170
      %v1172 = vpop.f32.mrb[0].mxu0
      %v1173 = vadd.f32 %v901, %v1172
      %v1174 = vpop.f32.mrb[0].mxu0
      %v1175 = vadd.f32 %v901, %v1174
      %1176 = vmatprep.mubr.bf16.mxu0 0
      %1177 = vmatmul.mubr.bf16.gmra.mrb[0].mxu0 %v1006
      %v1178 = vpop.f32.mrb[0].mxu0
      %v1179 = vadd.f32 %v906, %v1178
      %v1180 = vpop.f32.mrb[0].mxu0
      %v1181 = vadd.f32 %v906, %v1180
      %v1182 = vpop.f32.mrb[0].mxu0
      %v1183 = vadd.f32 %v911, %v1182
      %v1184 = vpop.f32.mrb[0].mxu0
      %v1185 = vadd.f32 %v911, %v1184
      %1186 = vmatprep.mubr.bf16.mxu0 0
      %1187 = vmatmul.mubr.bf16.gmra.mrb[0].mxu0 %v1007
      %v1188 = vpop.f32.mrb[0].mxu0
      %v1189 = vadd.f32 %v916, %v1188
      %v1190 = vpop.f32.mrb[0].mxu0
      %v1191 = vadd.f32 %v916, %v1190
      %v1192 = vpop.f32.mrb[0].mxu0
      %v1193 = vadd.f32 %v921, %v1192
      %v1194 = vpop.f32.mrb[0].mxu0
      %v1195 = vadd.f32 %v921, %v1194
      %1196 = vmatprep.mubr.bf16.mxu0 0
      %1197 = vmatmul.mubr.bf16.gmra.mrb[0].mxu0 %v1008
      %v1198 = vpop.f32.mrb[0].mxu0
      %v1199 = vadd.f32 %v926, %v1198
      %v1200 = vpop.f32.mrb[0].mxu0
      %v1201 = vadd.f32 %v926, %v1200
      %v1202 = vpop.f32.mrb[0].mxu0
      %v1203 = vadd.f32 %v931, %v1202
      %v1204 = vpop.f32.mrb[0].mxu0
      %v1205 = vadd.f32 %v931, %v1204
      %1206 = vmatprep.mubr.bf16.mxu0 0
      %1207 = vmatmul.mubr.bf16.gmra.mrb[0].mxu0 %v1009
      %v1208 = vpop.f32.mrb[0].mxu0
      %v1209 = vadd.f32 %v936, %v1208
      %v1210 = vpop.f32.mrb[0].mxu0
      %v1211 = vadd.f32 %v936, %v1210
      %v1212 = vpop.f32.mrb[0].mxu0
      %v1213 = vadd.f32 %v941, %v1212
      %v1214 = vpop.f32.mrb[0].mxu0
      %v1215 = vadd.f32 %v941, %v1214
      %1216 = vmatprep.mubr.bf16.mxu0 0
      %1217 = vmatmul.mubr.bf16.gmra.mrb[0].mxu0 %v1010
      %v1218 = vpop.f32.mrb[0].mxu0
      %v1219 = vadd.f32 %v946, %v1218
      %v1220 = vpop.f32.mrb[0].mxu0
      %v1221 = vadd.f32 %v946, %v1220
      %v1222 = vpop.f32.mrb[0].mxu0
      %v1223 = vadd.f32 %v951, %v1222
      %v1224 = vpop.f32.mrb[0].mxu0
      %v1225 = vadd.f32 %v951, %v1224
      %1226 = vmatprep.mubr.bf16.mxu0 0
      %1227 = vmatmul.mubr.bf16.gmra.mrb[0].mxu0 %v1011
      %v1228 = vpop.f32.mrb[0].mxu0
      %v1229 = vadd.f32 %v956, %v1228
      %v1230 = vpop.f32.mrb[0].mxu0
      %v1231 = vadd.f32 %v956, %v1230
      %v1232 = vpop.f32.mrb[0].mxu0
      %v1233 = vadd.f32 %v961, %v1232
      %v1234 = vpop.f32.mrb[0].mxu0
      %v1235 = vadd.f32 %v961, %v1234
      %1236 = vmatprep.mubr.bf16.mxu0 0
      %1237 = vmatmul.mubr.bf16.gmra.mrb[0].mxu0 %v1012
      %v1238 = vpop.f32.mrb[0].mxu0
      %v1239 = vadd.f32 %v966, %v1238
      %v1240 = vpop.f32.mrb[0].mxu0
      %v1241 = vadd.f32 %v966, %v1240
      %v1242 = vpop.f32.mrb[0].mxu0
      %v1243 = vadd.f32 %v971, %v1242
      %v1244 = vpop.f32.mrb[0].mxu0
      %v1245 = vadd.f32 %v971, %v1244
      %1246 = vdwg.mxu0
      %v1247 = vmax.f32 %v1056, 0.0
      %v1248 = vmax.f32 %v1058, 0.0
      %v1249 = vmax.f32 %v1169, 0.0
      %v1250 = vmax.f32 %v1171, 0.0
      %v1251 = vmax.f32 %v1060, 0.0
      %v1252 = vmax.f32 %v1062, 0.0
      %v1253 = vmax.f32 %v1173, 0.0
      %v1254 = vmax.f32 %v1175, 0.0
      %v1255 = vmax.f32 %v1066, 0.0
      %v1256 = vmax.f32 %v1068, 0.0
      %v1257 = vmax.f32 %v1179, 0.0
      %v1258 = vmax.f32 %v1181, 0.0
      %v1259 = vmax.f32 %v1070, 0.0
      %v1260 = vmax.f32 %v1072, 0.0
      %v1261 = vmax.f32 %v1183, 0.0
      %v1262 = vmax.f32 %v1185, 0.0
      %v1263 = vmax.f32 %v1076, 0.0
      %v1264 = vmax.f32 %v1078, 0.0
      %v1265 = vmax.f32 %v1189, 0.0
      %v1266 = vmax.f32 %v1191, 0.0
      %v1267 = vmax.f32 %v1080, 0.0
      %v1268 = vmax.f32 %v1082, 0.0
      %v1269 = vmax.f32 %v1193, 0.0
      %v1270 = vmax.f32 %v1195, 0.0
      %v1271 = vmax.f32 %v1086, 0.0
      %v1272 = vmax.f32 %v1088, 0.0
      %v1273 = vmax.f32 %v1199, 0.0
      %v1274 = vmax.f32 %v1201, 0.0
      %v1275 = vmax.f32 %v1090, 0.0
      %v1276 = vmax.f32 %v1092, 0.0
      %v1277 = vmax.f32 %v1203, 0.0
      %v1278 = vmax.f32 %v1205, 0.0
      %v1279 = vmax.f32 %v1096, 0.0
      %v1280 = vmax.f32 %v1098, 0.0
      %v1281 = vmax.f32 %v1209, 0.0
      %v1282 = vmax.f32 %v1211, 0.0
      %v1283 = vmax.f32 %v1100, 0.0
      %v1284 = vmax.f32 %v1102, 0.0
      %v1285 = vmax.f32 %v1213, 0.0
      %v1286 = vmax.f32 %v1215, 0.0
      %v1287 = vmax.f32 %v1106, 0.0
      %v1288 = vmax.f32 %v1108, 0.0
      %v1289 = vmax.f32 %v1219, 0.0
      %v1290 = vmax.f32 %v1221, 0.0
      %v1291 = vmax.f32 %v1110, 0.0
      %v1292 = vmax.f32 %v1112, 0.0
      %v1293 = vmax.f32 %v1223, 0.0
      %v1294 = vmax.f32 %v1225, 0.0
      %v1295 = vmax.f32 %v1116, 0.0
      %v1296 = vmax.f32 %v1118, 0.0
      %v1297 = vmax.f32 %v1229, 0.0
      %v1298 = vmax.f32 %v1231, 0.0
      %v1299 = vmax.f32 %v1120, 0.0
      %v1300 = vmax.f32 %v1122, 0.0
      %v1301 = vmax.f32 %v1233, 0.0
      %v1302 = vmax.f32 %v1235, 0.0
      %v1303 = vmax.f32 %v1126, 0.0
      %v1304 = vmax.f32 %v1128, 0.0
      %v1305 = vmax.f32 %v1239, 0.0
      %v1306 = vmax.f32 %v1241, 0.0
      %v1307 = vmax.f32 %v1130, 0.0
      %v1308 = vmax.f32 %v1132, 0.0
      %v1309 = vmax.f32 %v1243, 0.0
      %v1310 = vmax.f32 %v1245, 0.0
      %v1311 = vpack.c.bf16 %v1251, %v1247
      %v1312 = vpack.c.bf16 %v1252, %v1248
      %v1313 = vpack.c.bf16 %v1253, %v1249
      %v1314 = vpack.c.bf16 %v1254, %v1250
      %v1315 = vpack.c.bf16 %v1259, %v1255
      %v1316 = vpack.c.bf16 %v1260, %v1256
      %v1317 = vpack.c.bf16 %v1261, %v1257
      %v1318 = vpack.c.bf16 %v1262, %v1258
      %v1319 = vpack.c.bf16 %v1267, %v1263
      %v1320 = vpack.c.bf16 %v1268, %v1264
      %v1321 = vpack.c.bf16 %v1269, %v1265
      %v1322 = vpack.c.bf16 %v1270, %v1266
      %v1323 = vpack.c.bf16 %v1275, %v1271
      %v1324 = vpack.c.bf16 %v1276, %v1272
      %v1325 = vpack.c.bf16 %v1277, %v1273
      %v1326 = vpack.c.bf16 %v1278, %v1274
      %v1327 = vpack.c.bf16 %v1283, %v1279
      %v1328 = vpack.c.bf16 %v1284, %v1280
      %v1329 = vpack.c.bf16 %v1285, %v1281
      %v1330 = vpack.c.bf16 %v1286, %v1282
      %v1331 = vpack.c.bf16 %v1291, %v1287
      %v1332 = vpack.c.bf16 %v1292, %v1288
      %v1333 = vpack.c.bf16 %v1293, %v1289
      %v1334 = vpack.c.bf16 %v1294, %v1290
      %v1335 = vpack.c.bf16 %v1299, %v1295
      %v1336 = vpack.c.bf16 %v1300, %v1296
      %v1337 = vpack.c.bf16 %v1301, %v1297
      %v1338 = vpack.c.bf16 %v1302, %v1298
      %v1339 = vpack.c.bf16 %v1307, %v1303
      %v1340 = vpack.c.bf16 %v1308, %v1304
      %v1341 = vpack.c.bf16 %v1309, %v1305
      %v1342 = vpack.c.bf16 %v1310, %v1306
      %v1343 = vld [vmem:[%s5] sm:$0xf]
      %v1344 = vld [vmem:[%s5 + $0x4] sm:$0xf]
      %v1345 = vld [vmem:[%s5 + $0x8] sm:$0xf]
      %v1346 = vld [vmem:[%s5 + $0xc] sm:$0xf]
      %v1347 = vld [vmem:[%s5 + $0x10] sm:$0xf]
      %v1348 = vld [vmem:[%s5 + $0x14] sm:$0xf]
      %v1349 = vld [vmem:[%s5 + $0x18] sm:$0xf]
      %v1350 = vld [vmem:[%s5 + $0x1c] sm:$0xf]
      %v1351 = vld [vmem:[%s5 + $0x20] sm:$0xf]
      %v1352 = vld [vmem:[%s5 + $0x24] sm:$0xf]
      %v1353 = vld [vmem:[%s5 + $0x28] sm:$0xf]
      %v1354 = vld [vmem:[%s5 + $0x2c] sm:$0xf]
      %v1355 = vld [vmem:[%s5 + $0x30] sm:$0xf]
      %v1356 = vld [vmem:[%s5 + $0x34] sm:$0xf]
      %v1357 = vld [vmem:[%s5 + $0x38] sm:$0xf]
      %v1358 = vld [vmem:[%s5 + $0x3c] sm:$0xf]
      %v1359 = vld [vmem:[%s6] sm:$0xff]
      %v1360 = vld [vmem:[%s6 + $0x8] sm:$0xff]
      %v1361 = vld [vmem:[%s6 + $0x10] sm:$0xff]
      %v1362 = vld [vmem:[%s6 + $0x18] sm:$0xff]
      %v1363 = vld [vmem:[%s6 + $0x20] sm:$0xff]
      %v1364 = vld [vmem:[%s6 + $0x28] sm:$0xff]
      %v1365 = vld [vmem:[%s6 + $0x30] sm:$0xff]
      %v1366 = vld [vmem:[%s6 + $0x38] sm:$0xff]
      %v1367 = vld [vmem:[%s6 + $0x40] sm:$0xff]
      %v1368 = vld [vmem:[%s6 + $0x48] sm:$0xff]
      %v1369 = vld [vmem:[%s6 + $0x50] sm:$0xff]
      %v1370 = vld [vmem:[%s6 + $0x58] sm:$0xff]
      %v1371 = vld [vmem:[%s6 + $0x60] sm:$0xff]
      %v1372 = vld [vmem:[%s6 + $0x68] sm:$0xff]
      %v1373 = vld [vmem:[%s6 + $0x70] sm:$0xff]
      %v1374 = vld [vmem:[%s6 + $0x78] sm:$0xff]
      %1376 = vset.pattern.permute.xlu0 0
      %1377 = vperm.xlu0 %1376, %v1359
      %v1378 = vpop.permute.xlu0 %1377
      %1381 = vset.pattern.permute.xlu0 0
      %1382 = vperm.xlu0 %1381, %v1360
      %v1383 = vpop.permute.xlu0 %1382
      %1386 = vset.pattern.permute.xlu0 0
      %1387 = vperm.xlu0 %1386, %v1361
      %v1388 = vpop.permute.xlu0 %1387
      %1391 = vset.pattern.permute.xlu0 0
      %1392 = vperm.xlu0 %1391, %v1362
      %v1393 = vpop.permute.xlu0 %1392
      %1396 = vset.pattern.permute.xlu0 0
      %1397 = vperm.xlu0 %1396, %v1363
      %v1398 = vpop.permute.xlu0 %1397
      %1401 = vset.pattern.permute.xlu0 0
      %1402 = vperm.xlu0 %1401, %v1364
      %v1403 = vpop.permute.xlu0 %1402
      %1406 = vset.pattern.permute.xlu0 0
      %1407 = vperm.xlu0 %1406, %v1365
      %v1408 = vpop.permute.xlu0 %1407
      %1411 = vset.pattern.permute.xlu0 0
      %1412 = vperm.xlu0 %1411, %v1366
      %v1413 = vpop.permute.xlu0 %1412
      %1416 = vset.pattern.permute.xlu0 0
      %1417 = vperm.xlu0 %1416, %v1367
      %v1418 = vpop.permute.xlu0 %1417
      %1421 = vset.pattern.permute.xlu0 0
      %1422 = vperm.xlu0 %1421, %v1368
      %v1423 = vpop.permute.xlu0 %1422
      %1426 = vset.pattern.permute.xlu0 0
      %1427 = vperm.xlu0 %1426, %v1369
      %v1428 = vpop.permute.xlu0 %1427
      %1431 = vset.pattern.permute.xlu0 0
      %1432 = vperm.xlu0 %1431, %v1370
      %v1433 = vpop.permute.xlu0 %1432
      %1436 = vset.pattern.permute.xlu0 0
      %1437 = vperm.xlu0 %1436, %v1371
      %v1438 = vpop.permute.xlu0 %1437
      %1441 = vset.pattern.permute.xlu0 0
      %1442 = vperm.xlu0 %1441, %v1372
      %v1443 = vpop.permute.xlu0 %1442
      %1446 = vset.pattern.permute.xlu0 0
      %1447 = vperm.xlu0 %1446, %v1373
      %v1448 = vpop.permute.xlu0 %1447
      %1451 = vset.pattern.permute.xlu0 0
      %1452 = vperm.xlu0 %1451, %v1374
      %v1453 = vpop.permute.xlu0 %1452
      %v1471 = vunpack.c.l.b16 %v1343
      %v1472 = vunpack.c.l.b16 %v1344
      %v1473 = vunpack.c.l.b16 %v1345
      %v1474 = vunpack.c.l.b16 %v1346
      %v1475 = vunpack.c.l.b16 %v1347
      %v1476 = vunpack.c.l.b16 %v1348
      %v1477 = vunpack.c.l.b16 %v1349
      %v1478 = vunpack.c.l.b16 %v1350
      %v1479 = vunpack.c.l.b16 %v1351
      %v1480 = vunpack.c.l.b16 %v1352
      %v1481 = vunpack.c.l.b16 %v1353
      %v1482 = vunpack.c.l.b16 %v1354
      %v1483 = vunpack.c.l.b16 %v1355
      %v1484 = vunpack.c.l.b16 %v1356
      %v1485 = vunpack.c.l.b16 %v1357
      %v1486 = vunpack.c.l.b16 %v1358
      %v1487 = vpack.c.b16 %v1472, %v1471
      %v1488 = vpack.c.b16 %v1474, %v1473
      %v1489 = vpack.c.b16 %v1476, %v1475
      %v1490 = vpack.c.b16 %v1478, %v1477
      %v1491 = vpack.c.b16 %v1480, %v1479
      %v1492 = vpack.c.b16 %v1482, %v1481
      %v1493 = vpack.c.b16 %v1484, %v1483
      %v1494 = vpack.c.b16 %v1486, %v1485
      %1503 = vmatprep.subr.bf16.mxu0 %v1312
      %1504 = vmatpush1.bf16.msra.mxu0 %v1311
      %1505 = vmatprep.subr.bf16.mxu0 %v1316
      %1506 = vmatpush1.bf16.msra.mxu0 %v1315
      %1507 = vmatprep.subr.bf16.mxu0 %v1320
      %1508 = vmatpush1.bf16.msra.mxu0 %v1319
      %1509 = vmatprep.subr.bf16.mxu0 %v1324
      %1510 = vmatpush1.bf16.msra.mxu0 %v1323
      %1511 = vmatprep.subr.bf16.mxu0 %v1328
      %1512 = vmatpush1.bf16.msra.mxu0 %v1327
      %1513 = vmatprep.subr.bf16.mxu0 %v1332
      %1514 = vmatpush1.bf16.msra.mxu0 %v1331
      %1515 = vmatprep.subr.bf16.mxu0 %v1336
      %1516 = vmatpush1.bf16.msra.mxu0 %v1335
      %1517 = vmatprep.subr.bf16.mxu0 %v1340
      %1518 = vmatpush1.bf16.msra.mxu0 %v1339
      %1519 = vmatprep.subr.bf16.mxu0 0
      %1520 = vmatpush1.bf16.msra.mxu0 0
      %1521 = vmatprep.subr.bf16.mxu0 0
      %1522 = vmatpush1.bf16.msra.mxu0 0
      %1523 = vmatprep.subr.bf16.mxu0 0
      %1524 = vmatpush1.bf16.msra.mxu0 0
      %1525 = vmatprep.subr.bf16.mxu0 0
      %1526 = vmatpush1.bf16.msra.mxu0 0
      %1527 = vmatprep.subr.bf16.mxu0 0
      %1528 = vmatpush1.bf16.msra.mxu0 0
      %1529 = vmatprep.subr.bf16.mxu0 0
      %1530 = vmatpush1.bf16.msra.mxu0 0
      %1531 = vmatprep.subr.bf16.mxu0 0
      %1532 = vmatpush1.bf16.msra.mxu0 0
      %1533 = vmatprep.subr.bf16.mxu0 0
      %1534 = vmatpush1.bf16.msra.mxu0 0
      %1535 = vmatprep.mubr.bf16.mxu0 0
      %1536 = vmatmul.mubr.bf16.gmra.mrb[0].mxu0 %v1487
      %v1537 = vpop.f32.mrb[0].mxu0
      %v1538 = vadd.f32 %v1378, %v1537
      %v1539 = vpop.f32.mrb[0].mxu0
      %v1540 = vadd.f32 %v1378, %v1539
      %v1541 = vpop.f32.mrb[0].mxu0
      %v1542 = vadd.f32 %v1383, %v1541
      %v1543 = vpop.f32.mrb[0].mxu0
      %v1544 = vadd.f32 %v1383, %v1543
      %1545 = vmatprep.mubr.bf16.mxu0 0
      %1546 = vmatmul.mubr.bf16.gmra.mrb[0].mxu0 %v1488
      %v1547 = vpop.f32.mrb[0].mxu0
      %v1548 = vadd.f32 %v1388, %v1547
      %v1549 = vpop.f32.mrb[0].mxu0
      %v1550 = vadd.f32 %v1388, %v1549
      %v1551 = vpop.f32.mrb[0].mxu0
      %v1552 = vadd.f32 %v1393, %v1551
      %v1553 = vpop.f32.mrb[0].mxu0
      %v1554 = vadd.f32 %v1393, %v1553
      %1555 = vmatprep.mubr.bf16.mxu0 0
      %1556 = vmatmul.mubr.bf16.gmra.mrb[0].mxu0 %v1489
      %v1557 = vpop.f32.mrb[0].mxu0
      %v1558 = vadd.f32 %v1398, %v1557
      %v1559 = vpop.f32.mrb[0].mxu0
      %v1560 = vadd.f32 %v1398, %v1559
      %v1561 = vpop.f32.mrb[0].mxu0
      %v1562 = vadd.f32 %v1403, %v1561
      %v1563 = vpop.f32.mrb[0].mxu0
      %v1564 = vadd.f32 %v1403, %v1563
      %1565 = vmatprep.mubr.bf16.mxu0 0
      %1566 = vmatmul.mubr.bf16.gmra.mrb[0].mxu0 %v1490
      %v1567 = vpop.f32.mrb[0].mxu0
      %v1568 = vadd.f32 %v1408, %v1567
      %v1569 = vpop.f32.mrb[0].mxu0
      %v1570 = vadd.f32 %v1408, %v1569
      %v1571 = vpop.f32.mrb[0].mxu0
      %v1572 = vadd.f32 %v1413, %v1571
      %v1573 = vpop.f32.mrb[0].mxu0
      %v1574 = vadd.f32 %v1413, %v1573
      %1575 = vmatprep.mubr.bf16.mxu0 0
      %1576 = vmatmul.mubr.bf16.gmra.mrb[0].mxu0 %v1491
      %v1577 = vpop.f32.mrb[0].mxu0
      %v1578 = vadd.f32 %v1418, %v1577
      %v1579 = vpop.f32.mrb[0].mxu0
      %v1580 = vadd.f32 %v1418, %v1579
      %v1581 = vpop.f32.mrb[0].mxu0
      %v1582 = vadd.f32 %v1423, %v1581
      %v1583 = vpop.f32.mrb[0].mxu0
      %v1584 = vadd.f32 %v1423, %v1583
      %1585 = vmatprep.mubr.bf16.mxu0 0
      %1586 = vmatmul.mubr.bf16.gmra.mrb[0].mxu0 %v1492
      %v1587 = vpop.f32.mrb[0].mxu0
      %v1588 = vadd.f32 %v1428, %v1587
      %v1589 = vpop.f32.mrb[0].mxu0
      %v1590 = vadd.f32 %v1428, %v1589
      %v1591 = vpop.f32.mrb[0].mxu0
      %v1592 = vadd.f32 %v1433, %v1591
      %v1593 = vpop.f32.mrb[0].mxu0
      %v1594 = vadd.f32 %v1433, %v1593
      %1595 = vmatprep.mubr.bf16.mxu0 0
      %1596 = vmatmul.mubr.bf16.gmra.mrb[0].mxu0 %v1493
      %v1597 = vpop.f32.mrb[0].mxu0
      %v1598 = vadd.f32 %v1438, %v1597
      %v1599 = vpop.f32.mrb[0].mxu0
      %v1600 = vadd.f32 %v1438, %v1599
      %v1601 = vpop.f32.mrb[0].mxu0
      %v1602 = vadd.f32 %v1443, %v1601
      %v1603 = vpop.f32.mrb[0].mxu0
      %v1604 = vadd.f32 %v1443, %v1603
      %1605 = vmatprep.mubr.bf16.mxu0 0
      %1606 = vmatmul.mubr.bf16.gmra.mrb[0].mxu0 %v1494
      %v1607 = vpop.f32.mrb[0].mxu0
      %v1608 = vadd.f32 %v1448, %v1607
      %v1609 = vpop.f32.mrb[0].mxu0
      %v1610 = vadd.f32 %v1448, %v1609
      %v1611 = vpop.f32.mrb[0].mxu0
      %v1612 = vadd.f32 %v1453, %v1611
      %v1613 = vpop.f32.mrb[0].mxu0
      %v1614 = vadd.f32 %v1453, %v1613
      %1615 = vdwg.mxu0
      %1616 = vmatprep.subr.bf16.mxu0 %v1314
      %1617 = vmatpush1.bf16.msra.mxu0 %v1313
      %1618 = vmatprep.subr.bf16.mxu0 %v1318
      %1619 = vmatpush1.bf16.msra.mxu0 %v1317
      %1620 = vmatprep.subr.bf16.mxu0 %v1322
      %1621 = vmatpush1.bf16.msra.mxu0 %v1321
      %1622 = vmatprep.subr.bf16.mxu0 %v1326
      %1623 = vmatpush1.bf16.msra.mxu0 %v1325
      %1624 = vmatprep.subr.bf16.mxu0 %v1330
      %1625 = vmatpush1.bf16.msra.mxu0 %v1329
      %1626 = vmatprep.subr.bf16.mxu0 %v1334
      %1627 = vmatpush1.bf16.msra.mxu0 %v1333
      %1628 = vmatprep.subr.bf16.mxu0 %v1338
      %1629 = vmatpush1.bf16.msra.mxu0 %v1337
      %1630 = vmatprep.subr.bf16.mxu0 %v1342
      %1631 = vmatpush1.bf16.msra.mxu0 %v1341
      %1632 = vmatprep.subr.bf16.mxu0 0
      %1633 = vmatpush1.bf16.msra.mxu0 0
      %1634 = vmatprep.subr.bf16.mxu0 0
      %1635 = vmatpush1.bf16.msra.mxu0 0
      %1636 = vmatprep.subr.bf16.mxu0 0
      %1637 = vmatpush1.bf16.msra.mxu0 0
      %1638 = vmatprep.subr.bf16.mxu0 0
      %1639 = vmatpush1.bf16.msra.mxu0 0
      %1640 = vmatprep.subr.bf16.mxu0 0
      %1641 = vmatpush1.bf16.msra.mxu0 0
      %1642 = vmatprep.subr.bf16.mxu0 0
      %1643 = vmatpush1.bf16.msra.mxu0 0
      %1644 = vmatprep.subr.bf16.mxu0 0
      %1645 = vmatpush1.bf16.msra.mxu0 0
      %1646 = vmatprep.subr.bf16.mxu0 0
      %1647 = vmatpush1.bf16.msra.mxu0 0
      %1648 = vmatprep.mubr.bf16.mxu0 0
      %1649 = vmatmul.mubr.bf16.gmra.mrb[0].mxu0 %v1487
      %v1650 = vpop.f32.mrb[0].mxu0
      %v1651 = vadd.f32 %v1378, %v1650
      %v1652 = vpop.f32.mrb[0].mxu0
      %v1653 = vadd.f32 %v1378, %v1652
      %v1654 = vpop.f32.mrb[0].mxu0
      %v1655 = vadd.f32 %v1383, %v1654
      %v1656 = vpop.f32.mrb[0].mxu0
      %v1657 = vadd.f32 %v1383, %v1656
      %1658 = vmatprep.mubr.bf16.mxu0 0
      %1659 = vmatmul.mubr.bf16.gmra.mrb[0].mxu0 %v1488
      %v1660 = vpop.f32.mrb[0].mxu0
      %v1661 = vadd.f32 %v1388, %v1660
      %v1662 = vpop.f32.mrb[0].mxu0
      %v1663 = vadd.f32 %v1388, %v1662
      %v1664 = vpop.f32.mrb[0].mxu0
      %v1665 = vadd.f32 %v1393, %v1664
      %v1666 = vpop.f32.mrb[0].mxu0
      %v1667 = vadd.f32 %v1393, %v1666
      %1668 = vmatprep.mubr.bf16.mxu0 0
      %1669 = vmatmul.mubr.bf16.gmra.mrb[0].mxu0 %v1489
      %v1670 = vpop.f32.mrb[0].mxu0
      %v1671 = vadd.f32 %v1398, %v1670
      %v1672 = vpop.f32.mrb[0].mxu0
      %v1673 = vadd.f32 %v1398, %v1672
      %v1674 = vpop.f32.mrb[0].mxu0
      %v1675 = vadd.f32 %v1403, %v1674
      %v1676 = vpop.f32.mrb[0].mxu0
      %v1677 = vadd.f32 %v1403, %v1676
      %1678 = vmatprep.mubr.bf16.mxu0 0
      %1679 = vmatmul.mubr.bf16.gmra.mrb[0].mxu0 %v1490
      %v1680 = vpop.f32.mrb[0].mxu0
      %v1681 = vadd.f32 %v1408, %v1680
      %v1682 = vpop.f32.mrb[0].mxu0
      %v1683 = vadd.f32 %v1408, %v1682
      %v1684 = vpop.f32.mrb[0].mxu0
      %v1685 = vadd.f32 %v1413, %v1684
      %v1686 = vpop.f32.mrb[0].mxu0
      %v1687 = vadd.f32 %v1413, %v1686
      %1688 = vmatprep.mubr.bf16.mxu0 0
      %1689 = vmatmul.mubr.bf16.gmra.mrb[0].mxu0 %v1491
      %v1690 = vpop.f32.mrb[0].mxu0
      %v1691 = vadd.f32 %v1418, %v1690
      %v1692 = vpop.f32.mrb[0].mxu0
      %v1693 = vadd.f32 %v1418, %v1692
      %v1694 = vpop.f32.mrb[0].mxu0
      %v1695 = vadd.f32 %v1423, %v1694
      %v1696 = vpop.f32.mrb[0].mxu0
      %v1697 = vadd.f32 %v1423, %v1696
      %1698 = vmatprep.mubr.bf16.mxu0 0
      %1699 = vmatmul.mubr.bf16.gmra.mrb[0].mxu0 %v1492
      %v1700 = vpop.f32.mrb[0].mxu0
      %v1701 = vadd.f32 %v1428, %v1700
      %v1702 = vpop.f32.mrb[0].mxu0
      %v1703 = vadd.f32 %v1428, %v1702
      %v1704 = vpop.f32.mrb[0].mxu0
      %v1705 = vadd.f32 %v1433, %v1704
      %v1706 = vpop.f32.mrb[0].mxu0
      %v1707 = vadd.f32 %v1433, %v1706
      %1708 = vmatprep.mubr.bf16.mxu0 0
      %1709 = vmatmul.mubr.bf16.gmra.mrb[0].mxu0 %v1493
      %v1710 = vpop.f32.mrb[0].mxu0
      %v1711 = vadd.f32 %v1438, %v1710
      %v1712 = vpop.f32.mrb[0].mxu0
      %v1713 = vadd.f32 %v1438, %v1712
      %v1714 = vpop.f32.mrb[0].mxu0
      %v1715 = vadd.f32 %v1443, %v1714
      %v1716 = vpop.f32.mrb[0].mxu0
      %v1717 = vadd.f32 %v1443, %v1716
      %1718 = vmatprep.mubr.bf16.mxu0 0
      %1719 = vmatmul.mubr.bf16.gmra.mrb[0].mxu0 %v1494
      %v1720 = vpop.f32.mrb[0].mxu0
      %v1721 = vadd.f32 %v1448, %v1720
      %v1722 = vpop.f32.mrb[0].mxu0
      %v1723 = vadd.f32 %v1448, %v1722
      %v1724 = vpop.f32.mrb[0].mxu0
      %v1725 = vadd.f32 %v1453, %v1724
      %v1726 = vpop.f32.mrb[0].mxu0
      %v1727 = vadd.f32 %v1453, %v1726
      %1728 = vdwg.mxu0
      %v1729 = vmax.f32 %v1538, 0.0
      %v1730 = vmax.f32 %v1540, 0.0
      %v1731 = vmax.f32 %v1651, 0.0
      %v1732 = vmax.f32 %v1653, 0.0
      %v1733 = vmax.f32 %v1542, 0.0
      %v1734 = vmax.f32 %v1544, 0.0
      %v1735 = vmax.f32 %v1655, 0.0
      %v1736 = vmax.f32 %v1657, 0.0
      %v1737 = vmax.f32 %v1548, 0.0
      %v1738 = vmax.f32 %v1550, 0.0
      %v1739 = vmax.f32 %v1661, 0.0
      %v1740 = vmax.f32 %v1663, 0.0
      %v1741 = vmax.f32 %v1552, 0.0
      %v1742 = vmax.f32 %v1554, 0.0
      %v1743 = vmax.f32 %v1665, 0.0
      %v1744 = vmax.f32 %v1667, 0.0
      %v1745 = vmax.f32 %v1558, 0.0
      %v1746 = vmax.f32 %v1560, 0.0
      %v1747 = vmax.f32 %v1671, 0.0
      %v1748 = vmax.f32 %v1673, 0.0
      %v1749 = vmax.f32 %v1562, 0.0
      %v1750 = vmax.f32 %v1564, 0.0
      %v1751 = vmax.f32 %v1675, 0.0
      %v1752 = vmax.f32 %v1677, 0.0
      %v1753 = vmax.f32 %v1568, 0.0
      %v1754 = vmax.f32 %v1570, 0.0
      %v1755 = vmax.f32 %v1681, 0.0
      %v1756 = vmax.f32 %v1683, 0.0
      %v1757 = vmax.f32 %v1572, 0.0
      %v1758 = vmax.f32 %v1574, 0.0
      %v1759 = vmax.f32 %v1685, 0.0
      %v1760 = vmax.f32 %v1687, 0.0
      %v1761 = vmax.f32 %v1578, 0.0
      %v1762 = vmax.f32 %v1580, 0.0
      %v1763 = vmax.f32 %v1691, 0.0
      %v1764 = vmax.f32 %v1693, 0.0
      %v1765 = vmax.f32 %v1582, 0.0
      %v1766 = vmax.f32 %v1584, 0.0
      %v1767 = vmax.f32 %v1695, 0.0
      %v1768 = vmax.f32 %v1697, 0.0
      %v1769 = vmax.f32 %v1588, 0.0
      %v1770 = vmax.f32 %v1590, 0.0
      %v1771 = vmax.f32 %v1701, 0.0
      %v1772 = vmax.f32 %v1703, 0.0
      %v1773 = vmax.f32 %v1592, 0.0
      %v1774 = vmax.f32 %v1594, 0.0
      %v1775 = vmax.f32 %v1705, 0.0
      %v1776 = vmax.f32 %v1707, 0.0
      %v1777 = vmax.f32 %v1598, 0.0
      %v1778 = vmax.f32 %v1600, 0.0
      %v1779 = vmax.f32 %v1711, 0.0
      %v1780 = vmax.f32 %v1713, 0.0
      %v1781 = vmax.f32 %v1602, 0.0
      %v1782 = vmax.f32 %v1604, 0.0
      %v1783 = vmax.f32 %v1715, 0.0
      %v1784 = vmax.f32 %v1717, 0.0
      %v1785 = vmax.f32 %v1608, 0.0
      %v1786 = vmax.f32 %v1610, 0.0
      %v1787 = vmax.f32 %v1721, 0.0
      %v1788 = vmax.f32 %v1723, 0.0
      %v1789 = vmax.f32 %v1612, 0.0
      %v1790 = vmax.f32 %v1614, 0.0
      %v1791 = vmax.f32 %v1725, 0.0
      %v1792 = vmax.f32 %v1727, 0.0
      %v1793 = vpack.c.bf16 %v1733, %v1729
      %v1794 = vpack.c.bf16 %v1734, %v1730
      %v1795 = vpack.c.bf16 %v1735, %v1731
      %v1796 = vpack.c.bf16 %v1736, %v1732
      %v1797 = vpack.c.bf16 %v1741, %v1737
      %v1798 = vpack.c.bf16 %v1742, %v1738
      %v1799 = vpack.c.bf16 %v1743, %v1739
      %v1800 = vpack.c.bf16 %v1744, %v1740
      %v1801 = vpack.c.bf16 %v1749, %v1745
      %v1802 = vpack.c.bf16 %v1750, %v1746
      %v1803 = vpack.c.bf16 %v1751, %v1747
      %v1804 = vpack.c.bf16 %v1752, %v1748
      %v1805 = vpack.c.bf16 %v1757, %v1753
      %v1806 = vpack.c.bf16 %v1758, %v1754
      %v1807 = vpack.c.bf16 %v1759, %v1755
      %v1808 = vpack.c.bf16 %v1760, %v1756
      %v1809 = vpack.c.bf16 %v1765, %v1761
      %v1810 = vpack.c.bf16 %v1766, %v1762
      %v1811 = vpack.c.bf16 %v1767, %v1763
      %v1812 = vpack.c.bf16 %v1768, %v1764
      %v1813 = vpack.c.bf16 %v1773, %v1769
      %v1814 = vpack.c.bf16 %v1774, %v1770
      %v1815 = vpack.c.bf16 %v1775, %v1771
      %v1816 = vpack.c.bf16 %v1776, %v1772
      %v1817 = vpack.c.bf16 %v1781, %v1777
      %v1818 = vpack.c.bf16 %v1782, %v1778
      %v1819 = vpack.c.bf16 %v1783, %v1779
      %v1820 = vpack.c.bf16 %v1784, %v1780
      %v1821 = vpack.c.bf16 %v1789, %v1785
      %v1822 = vpack.c.bf16 %v1790, %v1786
      %v1823 = vpack.c.bf16 %v1791, %v1787
      %v1824 = vpack.c.bf16 %v1792, %v1788
      %v1825 = vld [vmem:[%s7] sm:$0xf]
      %v1826 = vld [vmem:[%s8] sm:$0xff]
      %1828 = vset.pattern.permute.xlu0 0
      %1829 = vperm.xlu0 %1828, %v1826
      %v1830 = vpop.permute.xlu0 %1829
      %1832 = vmatprep.subr.bf16.mxu0 %v1794
      %1833 = vmatpush1.bf16.msra.mxu0 %v1793
      %1834 = vmatprep.subr.bf16.mxu0 %v1798
      %1835 = vmatpush1.bf16.msra.mxu0 %v1797
      %1836 = vmatprep.subr.bf16.mxu0 %v1802
      %1837 = vmatpush1.bf16.msra.mxu0 %v1801
      %1838 = vmatprep.subr.bf16.mxu0 %v1806
      %1839 = vmatpush1.bf16.msra.mxu0 %v1805
      %1840 = vmatprep.subr.bf16.mxu0 %v1810
      %1841 = vmatpush1.bf16.msra.mxu0 %v1809
      %1842 = vmatprep.subr.bf16.mxu0 %v1814
      %1843 = vmatpush1.bf16.msra.mxu0 %v1813
      %1844 = vmatprep.subr.bf16.mxu0 %v1818
      %1845 = vmatpush1.bf16.msra.mxu0 %v1817
      %1846 = vmatprep.subr.bf16.mxu0 %v1822
      %1847 = vmatpush1.bf16.msra.mxu0 %v1821
      %1848 = vmatprep.subr.bf16.mxu0 0
      %1849 = vmatpush1.bf16.msra.mxu0 0
      %1850 = vmatprep.subr.bf16.mxu0 0
      %1851 = vmatpush1.bf16.msra.mxu0 0
      %1852 = vmatprep.subr.bf16.mxu0 0
      %1853 = vmatpush1.bf16.msra.mxu0 0
      %1854 = vmatprep.subr.bf16.mxu0 0
      %1855 = vmatpush1.bf16.msra.mxu0 0
      %1856 = vmatprep.subr.bf16.mxu0 0
      %1857 = vmatpush1.bf16.msra.mxu0 0
      %1858 = vmatprep.subr.bf16.mxu0 0
      %1859 = vmatpush1.bf16.msra.mxu0 0
      %1860 = vmatprep.subr.bf16.mxu0 0
      %1861 = vmatpush1.bf16.msra.mxu0 0
      %1862 = vmatprep.subr.bf16.mxu0 0
      %1863 = vmatpush1.bf16.msra.mxu0 0
      %1864 = vmatprep.mubr.bf16.mxu0 0
      %1865 = vmatmul.mubr.bf16.gmra.mrb[0].mxu0 %v1825
      %v1866 = vpop.f32.mrb[0].mxu0
      %v1867 = vadd.f32 %v1830, %v1866
      %v1868 = vpop.f32.mrb[0].mxu0
      %v1869 = vadd.f32 %v1830, %v1868
      %v1870 = vpop.f32.mrb[0].mxu0
      %v1871 = vpop.f32.mrb[0].mxu0
      %1872 = vdwg.mxu0
      %1873 = vmatprep.subr.bf16.mxu0 %v1796
      %1874 = vmatpush1.bf16.msra.mxu0 %v1795
      %1875 = vmatprep.subr.bf16.mxu0 %v1800
      %1876 = vmatpush1.bf16.msra.mxu0 %v1799
      %1877 = vmatprep.subr.bf16.mxu0 %v1804
      %1878 = vmatpush1.bf16.msra.mxu0 %v1803
      %1879 = vmatprep.subr.bf16.mxu0 %v1808
      %1880 = vmatpush1.bf16.msra.mxu0 %v1807
      %1881 = vmatprep.subr.bf16.mxu0 %v1812
      %1882 = vmatpush1.bf16.msra.mxu0 %v1811
      %1883 = vmatprep.subr.bf16.mxu0 %v1816
      %1884 = vmatpush1.bf16.msra.mxu0 %v1815
      %1885 = vmatprep.subr.bf16.mxu0 %v1820
      %1886 = vmatpush1.bf16.msra.mxu0 %v1819
      %1887 = vmatprep.subr.bf16.mxu0 %v1824
      %1888 = vmatpush1.bf16.msra.mxu0 %v1823
      %1889 = vmatprep.subr.bf16.mxu0 0
      %1890 = vmatpush1.bf16.msra.mxu0 0
      %1891 = vmatprep.subr.bf16.mxu0 0
      %1892 = vmatpush1.bf16.msra.mxu0 0
      %1893 = vmatprep.subr.bf16.mxu0 0
      %1894 = vmatpush1.bf16.msra.mxu0 0
      %1895 = vmatprep.subr.bf16.mxu0 0
      %1896 = vmatpush1.bf16.msra.mxu0 0
      %1897 = vmatprep.subr.bf16.mxu0 0
      %1898 = vmatpush1.bf16.msra.mxu0 0
      %1899 = vmatprep.subr.bf16.mxu0 0
      %1900 = vmatpush1.bf16.msra.mxu0 0
      %1901 = vmatprep.subr.bf16.mxu0 0
      %1902 = vmatpush1.bf16.msra.mxu0 0
      %1903 = vmatprep.subr.bf16.mxu0 0
      %1904 = vmatpush1.bf16.msra.mxu0 0
      %1905 = vmatprep.mubr.bf16.mxu0 0
      %1906 = vmatmul.mubr.bf16.gmra.mrb[0].mxu0 %v1825
      %v1907 = vpop.f32.mrb[0].mxu0
      %v1908 = vadd.f32 %v1830, %v1907
      %v1909 = vpop.f32.mrb[0].mxu0
      %v1910 = vadd.f32 %v1830, %v1909
      %v1911 = vpop.f32.mrb[0].mxu0
      %v1912 = vpop.f32.mrb[0].mxu0
      %1913 = vdwg.mxu0
      %1914 = vst [vmem:[%s334] sm:$0xff] %v1867
      %1915 = vst [vmem:[%s334 + $0x8] sm:$0xff] %v1869
      %1916 = vst [vmem:[%s334 + $0x10] sm:$0xff] %v1908
      %1917 = vst [vmem:[%s334 + $0x18] sm:$0xff] %v1910
      %s1918 = smul.u32 4, %s20
      %p1919 = scmp.lt.s32.totalorder %s1918, 7
      %s1920 = scalar_select %p1919, %s1918, 7
      %s1921 = smul.addr %s1920, 8
      %s1922 = scalar_lea.vmem %s9, %s1921
      // Predicated region
      $region57: #{samplenet_forward.1} parent=55 // pred_check
        %p1923 = pneg %p232
      $region58: #{samplenet_forward.1} parent=55 // pred_check_branch
        %1925 = sbr.rel (%p1923) target = $region60
      $region59: #{samplenet_forward.1} parent=55 // pred_region
        %s1926 = smul.u32 4, %s20
      $region60: #{samplenet_forward.1} parent=55 // pred_fallthru
        _
    $region56: #{samplenet_forward.1} parent=5 // pred_fallthru
      _
    %p1927 = scmp.le.s32.totalorder 2, %s15
    // Predicated region
    $region61: #{samplenet_forward.1} parent=5 // pred_check
      %p1928 = pneg %p1927
    $region62: #{samplenet_forward.1} parent=5 // pred_check_branch
      %1930 = sbr.rel (%p1928) target = $region64
    $region63: #{samplenet_forward.1} parent=5 // pred_region
      %s1931 = ssub.s32 %s15, 2
      // Predicated region
      $region65: #{samplenet_forward.1} parent=63 // pred_check
        %p1932 = pneg %p238
      $region66: #{samplenet_forward.1} parent=63 // pred_check_branch
        %1934 = sbr.rel (%p1932) target = $region68
      $region67: #{samplenet_forward.1} parent=63 // pred_region
        %s1935 = smul.u32 4, %s21
        %p1936 = scmp.lt.s32.totalorder %s1935, 7
        %s1937 = scalar_select %p1936, %s1935, 7
        %s1938 = smul.addr %s1937, 8
        %s1939 = scalar_lea.vmem %s9, %s1938
      $region68: #{samplenet_forward.1} parent=63 // pred_fallthru
        _
    $region64: #{samplenet_forward.1} parent=5 // pred_fallthru
      _
  $region6: #{samplenet_forward.1} parent=0 // loop_footer
    %s19 = sadd.s32 1, %s15
  $region7: #{samplenet_forward.1} parent=0 // loop_footer_branch
    %14 = sbr.rel target = $region3
  $region8: #{samplenet_forward.1} parent=0 // loop_exit
    _

</llo_original>
